<compile_context>
chip_gen: v6e
topology: v6e:2x2x1
jax: 0.10.0
libtpu: 0.0.40
codegen_flags: <defaults>
</compile_context>

<pallas_src>
import functools

import jax
import jax.numpy as jnp
from jax import lax
from jax.experimental import pallas as pl
from jax.experimental.pallas import tpu as pltpu

EPS = 1e-5


# ------------------------------ Pallas kernel ------------------------------ #
def _bottleneck_kernel(x_ref, w1_ref, b1_ref, w2_ref, b2_ref, w3_ref, b3_ref,
                       o_ref, y1_ref, *, stride, h_valid, w_valid):
    TH, Wo_pad, Cp = o_ref.shape            # per-block output rows / padded width
    TH_s, Wp, Pp = y1_ref.shape             # y1 slab (incl. 3x3 halo rows)
    Cin = x_ref.shape[-1]

    row_step = TH * stride
    row0 = pl.program_id(1) * row_step      # first padded input row of this slab
    if row_step % 8 == 0:
        row0 = pl.multiple_of(row0, 8)

    # ---- Stage 1: conv1 (1x1) + BN1 + ReLU for just the rows this block needs.
    # The spatial halo is forced to exactly zero (it must act as conv2's zero
    # padding even though the folded BN bias + ReLU would make it nonzero),
    # using a lane-broadcast (rows, Wp, 1) interior mask.  Result lives only in
    # a bf16 VMEM scratch and is re-read by the 3x3 taps below.
    x_slab = x_ref[pl.ds(row0, TH_s)]                       # (TH_s, Wp, Cin) bf16
    y1 = jnp.dot(x_slab.reshape(TH_s * Wp, Cin), w1_ref[...],
                 preferred_element_type=jnp.float32)
    y1 = jnp.maximum(y1 + b1_ref[...], 0.0).reshape(TH_s, Wp, Pp)
    r = row0 + lax.broadcasted_iota(jnp.int32, (TH_s, Wp, 1), 0)
    c = lax.broadcasted_iota(jnp.int32, (TH_s, Wp, 1), 1)
    interior = (r >= 1) & (r <= h_valid) & (c >= 1) & (c <= w_valid)
    y1_ref[...] = jnp.where(interior, y1, 0.0).astype(jnp.bfloat16)

    # ---- Stage 2: conv2 (3x3, pad=1, stride) + BN2 + ReLU.  Per kh, the three
    # kw-shifted windows are read directly from the scratch ref and fused along
    # the contraction dim -> 3 accumulating (TH*Wo_pad, 3*Pp) x (3*Pp, Pp) MXU
    # matmuls (K = 3*Pp fills the 256-deep MXU on v6e/v7x).
    acc = None
    for kh in range(3):
        if stride == 1:
            wins = [y1_ref[pl.ds(kh, TH), pl.ds(kw, Wo_pad), :]
                    for kw in range(3)]
        else:
            # TODO(synk): stride != 1 path (strided ref loads) is not exercised
            # by the test below.
            wins = [y1_ref[pl.ds(kh, TH, stride=stride),
                           pl.ds(kw, Wo_pad, stride=stride), :]
                    for kw in range(3)]
        lhs = jnp.concatenate(wins, axis=-1).reshape(TH * Wo_pad, 3 * Pp)
        part = jnp.dot(lhs, w2_ref[kh], preferred_element_type=jnp.float32)
        acc = part if acc is None else acc + part
    y2 = jnp.maximum(acc + b2_ref[...], 0.0).astype(jnp.bfloat16)

    # ---- Stage 3: conv3 (1x1) + BN3.  No ReLU / residual add: the module's
    # forward returns (out, residual) without combining them.
    y3 = jnp.dot(y2, w3_ref[...], preferred_element_type=jnp.float32) + b3_ref[...]
    o_ref[...] = y3.reshape(TH, Wo_pad, Cp).astype(o_ref.dtype)


# ------------------------------- Glue (JAX) -------------------------------- #
def _round_up(x, m):
    return (x + m - 1) // m * m


def _fold_bn(gamma, beta, mean, var):
    scale = gamma / jnp.sqrt(var + EPS)
    return scale, beta - mean * scale


def _pick_block_h(Ho, Wo_pad, requested=None, target_rows=256):
    """Largest divisor of Ho with ~<=target_rows matmul rows per block."""
    cand = requested if requested is not None else max(1, target_rows // max(Wo_pad, 1))
    cand = max(1, min(int(cand), Ho))
    while Ho % cand:
        cand -= 1
    return cand


def _vmem_limit_bytes(Hp, Wp, Cin, Pp, Cp, TH, TH_s, Wo_pad):
    x_blk = Hp * Wp * Cin * 2 * 2                 # bf16 input block, double-buffered
    out_blk = TH * Wo_pad * Cp * 4 * 2            # f32 output block, double-buffered
    w_blk = ((Cin * Pp + 9 * Pp * Pp + Pp * Cp) * 2 + (2 * Pp + Cp) * 4) * 2
    scratch = TH_s * Wp * Pp * 2                  # bf16 y1 slab, single-buffered
    live = TH * Wo_pad * (3 * Pp * 2 + Pp * 4 + Cp * 4)   # stage-2/3 live values
    need = x_blk + out_blk + w_blk + scratch + live
    try:
        cap = pltpu.get_tpu_info().vmem_capacity_bytes    # 128 MiB v5e/v6e, 64 MiB v7x
    except Exception:
        cap = 64 * 1024 * 1024
    hi = int(cap * 3 // 4)                        # leave ~25% headroom
    return int(max(min(2 * need + (4 << 20), hi), min(16 << 20, hi)))


def bottleneck_forward(x_nchw, params, stride=1, block_h=None):
    """Equivalent of Bottleneck.forward (downsample=None): returns (out, residual)."""
    residual = x_nchw
    N, Cin, H, W = x_nchw.shape
    planes = params["w1"].shape[0]
    cout = params["w3"].shape[0]
    Ho = (H + 2 - 3) // stride + 1
    Wo = (W + 2 - 3) // stride + 1

    Pp = _round_up(planes, 128)                   # lane-dense intermediate channels
    Cp = _round_up(cout, 128)                     # lane-dense output channels
    Wo_pad = _round_up(Wo, 8)                     # sublane-aligned in-kernel width
    TH = _pick_block_h(Ho, Wo_pad, block_h)
    HB = Ho // TH
    TH_s = (TH - 1) * stride + 3                  # slab rows incl. 3x3 halo

    Hp = H + 2
    Wp = _round_up(max(W + 2, (Wo_pad - 1) * stride + 3), 8)

    # Fold eval-mode BN scale/bias into the conv weights; zero-pad channel dims
    # so padded channels stay exactly zero through ReLU / matmuls.
    s1, b1 = _fold_bn(params["g1"], params["b1"], params["m1"], params["v1"])
    s2, b2 = _fold_bn(params["g2"], params["b2"], params["m2"], params["v2"])
    s3, b3 = _fold_bn(params["g3"], params["b3"], params["m3"], params["v3"])

    w1 = params["w1"].reshape(planes, Cin).T * s1[None, :]              # (Cin, planes)
    w1 = jnp.pad(w1, ((0, 0), (0, Pp - planes))).astype(jnp.bfloat16)
    b1p = jnp.pad(b1, (0, Pp - planes)).reshape(1, Pp).astype(jnp.float32)

    w2 = jnp.transpose(params["w2"], (2, 3, 1, 0)) * s2[None, None, None, :]  # (kh,kw,in,out)
    w2 = jnp.pad(w2, ((0, 0), (0, 0), (0, Pp - planes), (0, Pp - planes)))
    w2 = w2.reshape(3, 3 * Pp, Pp).astype(jnp.bfloat16)                 # rows: kw*Pp + cin
    b2p = jnp.pad(b2, (0, Pp - planes)).reshape(1, Pp).astype(jnp.float32)

    w3 = params["w3"].reshape(cout, planes).T * s3[None, :]             # (planes, cout)
    w3 = jnp.pad(w3, ((0, Pp - planes), (0, Cp - cout))).astype(jnp.bfloat16)
    b3p = jnp.pad(b3, (0, Cp - cout)).reshape(1, Cp).astype(jnp.float32)

    # NCHW -> NHWC, spatial zero halo (1 row/col, width widened so kw=2 windows
    # of the padded output width stay in-bounds), bf16 for the HBM->VMEM DMA.
    x_pad = jnp.transpose(x_nchw, (0, 2, 3, 1))
    x_pad = jnp.pad(x_pad, ((0, 0), (1, 1), (1, Wp - W - 1), (0, 0)))
    x_pad = x_pad.astype(jnp.bfloat16)

    flops = 2 * N * Ho * Wo_pad * (Cin * Pp + 9 * Pp * Pp + Pp * Cp)
    bytes_accessed = (x_pad.size + w1.size + w2.size + w3.size) * 2 \
                     + N * Ho * Wo_pad * Cp * 4

    kernel = functools.partial(_bottleneck_kernel, stride=stride,
                               h_valid=H, w_valid=W)
    # NOTE: the constant-index weight/bias blocks would ideally be
    # single-buffered (pipeline_mode=pl.Buffered(1)); their double-buffered
    # footprint is accounted for in _vmem_limit_bytes instead.
    out_padded = pl.pallas_call(
        kernel,
        out_shape=jax.ShapeDtypeStruct((N, Ho, Wo_pad, Cp), jnp.float32),
        grid_spec=pltpu.PrefetchScalarGridSpec(
            num_scalar_prefetch=0,
            grid=(N, HB),
            in_specs=[
                pl.BlockSpec((None, Hp, Wp, Cin), lambda n, hb: (n, 0, 0, 0)),
                pl.BlockSpec((Cin, Pp), lambda n, hb: (0, 0)),
                pl.BlockSpec((1, Pp), lambda n, hb: (0, 0)),
                pl.BlockSpec((3, 3 * Pp, Pp), lambda n, hb: (0, 0, 0)),
                pl.BlockSpec((1, Pp), lambda n, hb: (0, 0)),
                pl.BlockSpec((Pp, Cp), lambda n, hb: (0, 0)),
                pl.BlockSpec((1, Cp), lambda n, hb: (0, 0)),
            ],
            out_specs=pl.BlockSpec((None, TH, Wo_pad, Cp),
                                   lambda n, hb: (n, hb, 0, 0)),
            scratch_shapes=[pltpu.VMEM((TH_s, Wp, Pp), jnp.bfloat16)],
        ),
        compiler_params=pltpu.CompilerParams(
            dimension_semantics=("parallel", "parallel"),
            vmem_limit_bytes=_vmem_limit_bytes(Hp, Wp, Cin, Pp, Cp, TH, TH_s, Wo_pad),
        ),
        cost_estimate=pl.CostEstimate(flops=flops, transcendentals=0,
                                      bytes_accessed=bytes_accessed),
    )(x_pad, w1, b1p, w2, b2p, w3, b3p)

    out = out_padded[:, :, :Wo, :cout]                  # drop width/channel padding
    out = jnp.transpose(out, (0, 3, 1, 2))              # NHWC -> NCHW (module contract)
    return out, residual


# --------------------------- Pure-JAX reference ----------------------------- #
def _ref_forward(x, p, stride=1):
    """XLA reference with the same bf16-operand / f32-accumulate conv numerics."""
    dn = ("NCHW", "OIHW", "NCHW")

    def conv(y, w, s, pad):
        return jax.lax.conv_general_dilated(
            y.astype(jnp.bfloat16), w.astype(jnp.bfloat16), (s, s), pad,
            dimension_numbers=dn, preferred_element_type=jnp.float32)

    def bn(y, g, b, m, v):
        inv = 1.0 / jnp.sqrt(v + EPS)
        return (y - m[None, :, None, None]) * (g * inv)[None, :, None, None] \
               + b[None, :, None, None]

    out = conv(x, p["w1"], 1, "VALID")
    out = jax.nn.relu(bn(out, p["g1"], p["b1"], p["m1"], p["v1"]))
    out = conv(out, p["w2"], stride, ((1, 1), (1, 1)))
    out = jax.nn.relu(bn(out, p["g2"], p["b2"], p["m2"], p["v2"]))
    out = conv(out, p["w3"], 1, "VALID")
    out = bn(out, p["g3"], p["b3"], p["m3"], p["v3"])
    return out, x


# ---------------------------------- Main ------------------------------------ #
if __name__ == "__main__":
    key = jax.random.PRNGKey(0)
    inplanes, planes, expansion = 16, 4, 4
    N, H, W = 2, 16, 16
    stride = 1
    cout = planes * expansion

    ks = jax.random.split(key, 16)
    params = {
        # conv weights, PyTorch OIHW layout
        "w1": 0.2 * jax.random.normal(ks[0], (planes, inplanes, 1, 1), jnp.float32),
        "w2": 0.2 * jax.random.normal(ks[1], (planes, planes, 3, 3), jnp.float32),
        "w3": 0.2 * jax.random.normal(ks[2], (cout, planes, 1, 1), jnp.float32),
        # bn1
        "g1": 1.0 + 0.1 * jax.random.normal(ks[3], (planes,), jnp.float32),
        "b1": 0.1 * jax.random.normal(ks[4], (planes,), jnp.float32),
        "m1": 0.1 * jax.random.normal(ks[5], (planes,), jnp.float32),
        "v1": 1.0 + 0.1 * jax.random.uniform(ks[6], (planes,), jnp.float32),
        # bn2
        "g2": 1.0 + 0.1 * jax.random.normal(ks[7], (planes,), jnp.float32),
        "b2": 0.1 * jax.random.normal(ks[8], (planes,), jnp.float32),
        "m2": 0.1 * jax.random.normal(ks[9], (planes,), jnp.float32),
        "v2": 1.0 + 0.1 * jax.random.uniform(ks[10], (planes,), jnp.float32),
        # bn3
        "g3": 1.0 + 0.1 * jax.random.normal(ks[11], (cout,), jnp.float32),
        "b3": 0.1 * jax.random.normal(ks[12], (cout,), jnp.float32),
        "m3": 0.1 * jax.random.normal(ks[13], (cout,), jnp.float32),
        "v3": 1.0 + 0.1 * jax.random.uniform(ks[14], (cout,), jnp.float32),
    }

    x = jax.random.normal(ks[15], (N, inplanes, H, W), jnp.float32)

    fwd = jax.jit(bottleneck_forward, static_argnums=(2, 3))
    out, residual = fwd(x, params, stride, 4)           # block_h=4 -> grid (2, 4)
    jax.block_until_ready((out, residual))

    # sanity check against a pure-JAX/XLA reference (bf16 conv operands)
    ref_out, ref_res = _ref_forward(x, params, stride)
    assert out.shape == (N, cout, H // stride, W // stride)
    assert residual.shape == x.shape
    assert bool(jnp.allclose(residual, ref_res))
    max_err = float(jnp.max(jnp.abs(out - ref_out)))
    assert bool(jnp.allclose(out, ref_out, rtol=2e-2, atol=2e-2)), max_err

    print("KERNEL_OK")
</pallas_src>

<mosaic_0001>
module attributes {stable_mosaic.version = 11 : i64} {
  func.func @_bottleneck_kernel(%arg0: i32, %arg1: i32, %arg2: memref<1x18x24x16xbf16, #tpu.memory_space<vmem>>, %arg3: memref<16x128xbf16, #tpu.memory_space<vmem>>, %arg4: memref<1x128xf32, #tpu.memory_space<vmem>>, %arg5: memref<3x384x128xbf16, #tpu.memory_space<vmem>>, %arg6: memref<1x128xf32, #tpu.memory_space<vmem>>, %arg7: memref<128x128xbf16, #tpu.memory_space<vmem>>, %arg8: memref<1x128xf32, #tpu.memory_space<vmem>>, %arg9: memref<1x4x16x128xf32, #tpu.memory_space<vmem>>, %arg10: memref<6x24x128xbf16, #tpu.memory_space<vmem>>) attributes {dimension_semantics = [#tpu.dimension_semantics<parallel>, #tpu.dimension_semantics<parallel>], iteration_bounds = array<i64: 2, 4>, scalar_prefetch = 0 : i64, scratch_operands = 1 : i64, tpu.core_type = #tpu.core_type<tc>, window_params = [{transform_indices = @transform_0, window_bounds = array<i64: 1, 18, 24, 16>}, {pipeline_mode = #tpu.pipeline_mode<synchronous>, transform_indices = @transform_1, window_bounds = array<i64: 16, 128>}, {pipeline_mode = #tpu.pipeline_mode<synchronous>, transform_indices = @transform_2, window_bounds = array<i64: 1, 128>}, {pipeline_mode = #tpu.pipeline_mode<synchronous>, transform_indices = @transform_3, window_bounds = array<i64: 3, 384, 128>}, {pipeline_mode = #tpu.pipeline_mode<synchronous>, transform_indices = @transform_4, window_bounds = array<i64: 1, 128>}, {pipeline_mode = #tpu.pipeline_mode<synchronous>, transform_indices = @transform_5, window_bounds = array<i64: 128, 128>}, {pipeline_mode = #tpu.pipeline_mode<synchronous>, transform_indices = @transform_6, window_bounds = array<i64: 1, 128>}, {transform_indices = @transform_7, window_bounds = array<i64: 1, 4, 16, 128>}]} {
    %c4_i32 = arith.constant 4 : i32
    %0 = arith.muli %arg1, %c4_i32 : i32
    %c0 = arith.constant 0 : index
    %1 = arith.index_cast %0 : i32 to index
    %c0_0 = arith.constant 0 : index
    %c0_1 = arith.constant 0 : index
    %2 = vector.load %arg2[%c0, %1, %c0_0, %c0_1] : memref<1x18x24x16xbf16, #tpu.memory_space<vmem>>, vector<1x6x24x16xbf16>
    %3 = vector.shape_cast %2 : vector<1x6x24x16xbf16> to vector<6x24x16xbf16>
    %4 = vector.shape_cast %3 : vector<6x24x16xbf16> to vector<144x16xbf16>
    %c0_2 = arith.constant 0 : index
    %c0_3 = arith.constant 0 : index
    %5 = vector.load %arg3[%c0_2, %c0_3] : memref<16x128xbf16, #tpu.memory_space<vmem>>, vector<16x128xbf16>
    %cst = arith.constant dense<0.000000e+00> : vector<144x128xf32>
    %6 = tpu.matmul %4, %5, %cst {dimension_numbers = #tpu.dot_dimension_numbers<[1], [0], [0], [1], [0, 0, 1, 1], [], []>} : vector<144x16xbf16>, vector<16x128xbf16>, vector<144x128xf32> -> vector<144x128xf32>
    %c0_4 = arith.constant 0 : index
    %c0_5 = arith.constant 0 : index
    %7 = vector.load %arg4[%c0_4, %c0_5] : memref<1x128xf32, #tpu.memory_space<vmem>>, vector<1x128xf32>
    %8 = vector.broadcast %7 : vector<1x128xf32> to vector<144x128xf32>
    %9 = arith.addf %6, %8 : vector<144x128xf32>
    %cst_6 = arith.constant 0.000000e+00 : f32
    %10 = vector.broadcast %cst_6 : f32 to vector<144x128xf32>
    %11 = arith.maximumf %9, %10 : vector<144x128xf32>
    %12 = vector.shape_cast %11 : vector<144x128xf32> to vector<6x24x128xf32>
    %13 = tpu.iota {dimensions = array<i32: 0>} : vector<6x24x1xi32>
    %14 = vector.broadcast %0 : i32 to vector<6x24x1xi32>
    %15 = arith.addi %14, %13 : vector<6x24x1xi32>
    %16 = tpu.iota {dimensions = array<i32: 1>} : vector<6x24x1xi32>
    %c1_i32 = arith.constant 1 : i32
    %17 = vector.broadcast %c1_i32 : i32 to vector<6x24x1xi32>
    %18 = arith.cmpi sge, %15, %17 : vector<6x24x1xi32>
    %c16_i32 = arith.constant 16 : i32
    %19 = vector.broadcast %c16_i32 : i32 to vector<6x24x1xi32>
    %20 = arith.cmpi sle, %15, %19 : vector<6x24x1xi32>
    %21 = arith.andi %18, %20 : vector<6x24x1xi1>
    %c1_i32_7 = arith.constant 1 : i32
    %22 = vector.broadcast %c1_i32_7 : i32 to vector<6x24x1xi32>
    %23 = arith.cmpi sge, %16, %22 : vector<6x24x1xi32>
    %24 = arith.andi %21, %23 : vector<6x24x1xi1>
    %c16_i32_8 = arith.constant 16 : i32
    %25 = vector.broadcast %c16_i32_8 : i32 to vector<6x24x1xi32>
    %26 = arith.cmpi sle, %16, %25 : vector<6x24x1xi32>
    %27 = arith.andi %24, %26 : vector<6x24x1xi1>
    %cst_9 = arith.constant 0.000000e+00 : f32
    %28 = vector.shape_cast %27 : vector<6x24x1xi1> to vector<6x24x1xi1>
    %29 = vector.broadcast %28 : vector<6x24x1xi1> to vector<6x24x128xi1>
    %30 = vector.broadcast %cst_9 : f32 to vector<6x24x128xf32>
    %31 = arith.select %29, %12, %30 : vector<6x24x128xi1>, vector<6x24x128xf32>
    %32 = arith.truncf %31 : vector<6x24x128xf32> to vector<6x24x128xbf16>
    %c0_10 = arith.constant 0 : index
    %c0_11 = arith.constant 0 : index
    %c0_12 = arith.constant 0 : index
    %33 = vector.load %arg10[%c0_10, %c0_11, %c0_12] : memref<6x24x128xbf16, #tpu.memory_space<vmem>>, vector<6x24x128xbf16>
    tpu.vector_store %arg10[%c0_10, %c0_11, %c0_12], %32 {strides = array<i32>} : memref<6x24x128xbf16, #tpu.memory_space<vmem>>, vector<6x24x128xbf16>,
    %c0_13 = arith.constant 0 : index
    %c0_14 = arith.constant 0 : index
    %c0_15 = arith.constant 0 : index
    %34 = vector.load %arg10[%c0_13, %c0_14, %c0_15] : memref<6x24x128xbf16, #tpu.memory_space<vmem>>, vector<4x16x128xbf16>
    %c0_16 = arith.constant 0 : index
    %c1 = arith.constant 1 : index
    %c0_17 = arith.constant 0 : index
    %35 = vector.load %arg10[%c0_16, %c1, %c0_17] : memref<6x24x128xbf16, #tpu.memory_space<vmem>>, vector<4x16x128xbf16>
    %c0_18 = arith.constant 0 : index
    %c2 = arith.constant 2 : index
    %c0_19 = arith.constant 0 : index
    %36 = vector.load %arg10[%c0_18, %c2, %c0_19] : memref<6x24x128xbf16, #tpu.memory_space<vmem>>, vector<4x16x128xbf16>
    %37 = tpu.concatenate %34, %35, %36 in 2 : vector<4x16x128xbf16>, vector<4x16x128xbf16>, vector<4x16x128xbf16> -> vector<4x16x384xbf16>
    %38 = vector.shape_cast %37 : vector<4x16x384xbf16> to vector<64x384xbf16>
    %c0_20 = arith.constant 0 : index
    %c0_21 = arith.constant 0 : index
    %c0_22 = arith.constant 0 : index
    %39 = vector.load %arg5[%c0_20, %c0_21, %c0_22] : memref<3x384x128xbf16, #tpu.memory_space<vmem>>, vector<1x384x128xbf16>
    %40 = vector.shape_cast %39 : vector<1x384x128xbf16> to vector<384x128xbf16>
    %cst_23 = arith.constant dense<0.000000e+00> : vector<64x128xf32>
    %41 = tpu.matmul %38, %40, %cst_23 {dimension_numbers = #tpu.dot_dimension_numbers<[1], [0], [0], [1], [0, 0, 1, 1], [], []>} : vector<64x384xbf16>, vector<384x128xbf16>, vector<64x128xf32> -> vector<64x128xf32>
    %c1_24 = arith.constant 1 : index
    %c0_25 = arith.constant 0 : index
    %c0_26 = arith.constant 0 : index
    %42 = vector.load %arg10[%c1_24, %c0_25, %c0_26] : memref<6x24x128xbf16, #tpu.memory_space<vmem>>, vector<4x16x128xbf16>
    %c1_27 = arith.constant 1 : index
    %c1_28 = arith.constant 1 : index
    %c0_29 = arith.constant 0 : index
    %43 = vector.load %arg10[%c1_27, %c1_28, %c0_29] : memref<6x24x128xbf16, #tpu.memory_space<vmem>>, vector<4x16x128xbf16>
    %c1_30 = arith.constant 1 : index
    %c2_31 = arith.constant 2 : index
    %c0_32 = arith.constant 0 : index
    %44 = vector.load %arg10[%c1_30, %c2_31, %c0_32] : memref<6x24x128xbf16, #tpu.memory_space<vmem>>, vector<4x16x128xbf16>
    %45 = tpu.concatenate %42, %43, %44 in 2 : vector<4x16x128xbf16>, vector<4x16x128xbf16>, vector<4x16x128xbf16> -> vector<4x16x384xbf16>
    %46 = vector.shape_cast %45 : vector<4x16x384xbf16> to vector<64x384xbf16>
    %c1_33 = arith.constant 1 : index
    %c0_34 = arith.constant 0 : index
    %c0_35 = arith.constant 0 : index
    %47 = vector.load %arg5[%c1_33, %c0_34, %c0_35] : memref<3x384x128xbf16, #tpu.memory_space<vmem>>, vector<1x384x128xbf16>
    %48 = vector.shape_cast %47 : vector<1x384x128xbf16> to vector<384x128xbf16>
    %cst_36 = arith.constant dense<0.000000e+00> : vector<64x128xf32>
    %49 = tpu.matmul %46, %48, %cst_36 {dimension_numbers = #tpu.dot_dimension_numbers<[1], [0], [0], [1], [0, 0, 1, 1], [], []>} : vector<64x384xbf16>, vector<384x128xbf16>, vector<64x128xf32> -> vector<64x128xf32>
    %50 = arith.addf %41, %49 : vector<64x128xf32>
    %c2_37 = arith.constant 2 : index
    %c0_38 = arith.constant 0 : index
    %c0_39 = arith.constant 0 : index
    %51 = vector.load %arg10[%c2_37, %c0_38, %c0_39] : memref<6x24x128xbf16, #tpu.memory_space<vmem>>, vector<4x16x128xbf16>
    %c2_40 = arith.constant 2 : index
    %c1_41 = arith.constant 1 : index
    %c0_42 = arith.constant 0 : index
    %52 = vector.load %arg10[%c2_40, %c1_41, %c0_42] : memref<6x24x128xbf16, #tpu.memory_space<vmem>>, vector<4x16x128xbf16>
    %c2_43 = arith.constant 2 : index
    %c2_44 = arith.constant 2 : index
    %c0_45 = arith.constant 0 : index
    %53 = vector.load %arg10[%c2_43, %c2_44, %c0_45] : memref<6x24x128xbf16, #tpu.memory_space<vmem>>, vector<4x16x128xbf16>
    %54 = tpu.concatenate %51, %52, %53 in 2 : vector<4x16x128xbf16>, vector<4x16x128xbf16>, vector<4x16x128xbf16> -> vector<4x16x384xbf16>
    %55 = vector.shape_cast %54 : vector<4x16x384xbf16> to vector<64x384xbf16>
    %c2_46 = arith.constant 2 : index
    %c0_47 = arith.constant 0 : index
    %c0_48 = arith.constant 0 : index
    %56 = vector.load %arg5[%c2_46, %c0_47, %c0_48] : memref<3x384x128xbf16, #tpu.memory_space<vmem>>, vector<1x384x128xbf16>
    %57 = vector.shape_cast %56 : vector<1x384x128xbf16> to vector<384x128xbf16>
    %cst_49 = arith.constant dense<0.000000e+00> : vector<64x128xf32>
    %58 = tpu.matmul %55, %57, %cst_49 {dimension_numbers = #tpu.dot_dimension_numbers<[1], [0], [0], [1], [0, 0, 1, 1], [], []>} : vector<64x384xbf16>, vector<384x128xbf16>, vector<64x128xf32> -> vector<64x128xf32>
    %59 = arith.addf %50, %58 : vector<64x128xf32>
    %c0_50 = arith.constant 0 : index
    %c0_51 = arith.constant 0 : index
    %60 = vector.load %arg6[%c0_50, %c0_51] : memref<1x128xf32, #tpu.memory_space<vmem>>, vector<1x128xf32>
    %61 = vector.broadcast %60 : vector<1x128xf32> to vector<64x128xf32>
    %62 = arith.addf %59, %61 : vector<64x128xf32>
    %cst_52 = arith.constant 0.000000e+00 : f32
    %63 = vector.broadcast %cst_52 : f32 to vector<64x128xf32>
    %64 = arith.maximumf %62, %63 : vector<64x128xf32>
    %65 = arith.truncf %64 : vector<64x128xf32> to vector<64x128xbf16>
    %c0_53 = arith.constant 0 : index
    %c0_54 = arith.constant 0 : index
    %66 = vector.load %arg7[%c0_53, %c0_54] : memref<128x128xbf16, #tpu.memory_space<vmem>>, vector<128x128xbf16>
    %cst_55 = arith.constant dense<0.000000e+00> : vector<64x128xf32>
    %67 = tpu.matmul %65, %66, %cst_55 {dimension_numbers = #tpu.dot_dimension_numbers<[1], [0], [0], [1], [0, 0, 1, 1], [], []>} : vector<64x128xbf16>, vector<128x128xbf16>, vector<64x128xf32> -> vector<64x128xf32>
    %c0_56 = arith.constant 0 : index
    %c0_57 = arith.constant 0 : index
    %68 = vector.load %arg8[%c0_56, %c0_57] : memref<1x128xf32, #tpu.memory_space<vmem>>, vector<1x128xf32>
    %69 = vector.broadcast %68 : vector<1x128xf32> to vector<64x128xf32>
    %70 = arith.addf %67, %69 : vector<64x128xf32>
    %71 = vector.shape_cast %70 : vector<64x128xf32> to vector<4x16x128xf32>
    %c0_58 = arith.constant 0 : index
    %c0_59 = arith.constant 0 : index
    %c0_60 = arith.constant 0 : index
    %c0_61 = arith.constant 0 : index
    %72 = vector.load %arg9[%c0_58, %c0_59, %c0_60, %c0_61] : memref<1x4x16x128xf32, #tpu.memory_space<vmem>>, vector<1x4x16x128xf32>
    %73 = vector.shape_cast %72 : vector<1x4x16x128xf32> to vector<4x16x128xf32>
    %74 = vector.shape_cast %71 : vector<4x16x128xf32> to vector<1x4x16x128xf32>
    tpu.vector_store %arg9[%c0_58, %c0_59, %c0_60, %c0_61], %74 {strides = array<i32>} : memref<1x4x16x128xf32, #tpu.memory_space<vmem>>, vector<1x4x16x128xf32>,
    return
  }
  func.func @transform_0(%arg0: i32, %arg1: i32) -> (i32, i32, i32, i32) {
    %c0_i32 = arith.constant 0 : i32
    %c0_i32_0 = arith.constant 0 : i32
    %c0_i32_1 = arith.constant 0 : i32
    %c0_i32_2 = arith.constant 0 : i32
    return %arg0, %c0_i32, %c0_i32_0, %c0_i32_1 : i32, i32, i32, i32
  }
  func.func @transform_1(%arg0: i32, %arg1: i32) -> (i32, i32) {
    %c0_i32 = arith.constant 0 : i32
    %c0_i32_0 = arith.constant 0 : i32
    %c0_i32_1 = arith.constant 0 : i32
    return %c0_i32, %c0_i32_0 : i32, i32
  }
  func.func @transform_2(%arg0: i32, %arg1: i32) -> (i32, i32) {
    %c0_i32 = arith.constant 0 : i32
    %c0_i32_0 = arith.constant 0 : i32
    %c0_i32_1 = arith.constant 0 : i32
    return %c0_i32, %c0_i32_0 : i32, i32
  }
  func.func @transform_3(%arg0: i32, %arg1: i32) -> (i32, i32, i32) {
    %c0_i32 = arith.constant 0 : i32
    %c0_i32_0 = arith.constant 0 : i32
    %c0_i32_1 = arith.constant 0 : i32
    %c0_i32_2 = arith.constant 0 : i32
    return %c0_i32, %c0_i32_0, %c0_i32_1 : i32, i32, i32
  }
  func.func @transform_4(%arg0: i32, %arg1: i32) -> (i32, i32) {
    %c0_i32 = arith.constant 0 : i32
    %c0_i32_0 = arith.constant 0 : i32
    %c0_i32_1 = arith.constant 0 : i32
    return %c0_i32, %c0_i32_0 : i32, i32
  }
  func.func @transform_5(%arg0: i32, %arg1: i32) -> (i32, i32) {
    %c0_i32 = arith.constant 0 : i32
    %c0_i32_0 = arith.constant 0 : i32
    %c0_i32_1 = arith.constant 0 : i32
    return %c0_i32, %c0_i32_0 : i32, i32
  }
  func.func @transform_6(%arg0: i32, %arg1: i32) -> (i32, i32) {
    %c0_i32 = arith.constant 0 : i32
    %c0_i32_0 = arith.constant 0 : i32
    %c0_i32_1 = arith.constant 0 : i32
    return %c0_i32, %c0_i32_0 : i32, i32
  }
  func.func @transform_7(%arg0: i32, %arg1: i32) -> (i32, i32, i32, i32) {
    %c0_i32 = arith.constant 0 : i32
    %c0_i32_0 = arith.constant 0 : i32
    %c0_i32_1 = arith.constant 0 : i32
    return %arg0, %arg1, %c0_i32, %c0_i32_0 : i32, i32, i32, i32
  }
}

</mosaic_0001>

<llo_original>
// kernel: bottleneck_forward.1
$region0: #{bottleneck_forward.1}
  #allocation0 [shape = 'u32[]', space=smem, size = 0x4, offset = 0x4, fixed_abs, tag = 'smem constant byte address 0x4 - core index']
  #allocation1 [shape = 'u32[144,128]{1,0:T(1,128)}', space=vmem, size = 0x12000, scoped, tag = 'internal scratch']
  #allocation2 [shape = 'bf16[6,24,128]{2,1,0:T(8,128)(2,1)}', space=vmem, size = 0x9000, scoped, tag = 'scratch operand']
  %s0 = inlined_call_operand.vmem [shape: bf16[2,18,24,16], index: 0, kind: input, shape index: {}]
  %s1 = inlined_call_operand.vmem [shape: bf16[16,128], index: 1, kind: input, shape index: {}]
  %s2 = inlined_call_operand.vmem [shape: f32[1,128], index: 2, kind: input, shape index: {}]
  %s3 = inlined_call_operand.vmem [shape: bf16[3,384,128], index: 3, kind: input, shape index: {}]
  %s4 = inlined_call_operand.vmem [shape: f32[1,128], index: 4, kind: input, shape index: {}]
  %s5 = inlined_call_operand.vmem [shape: bf16[128,128], index: 5, kind: input, shape index: {}]
  %s6 = inlined_call_operand.vmem [shape: f32[1,128], index: 6, kind: input, shape index: {}]
  %s7 = inlined_call_operand.vmem [shape: f32[2,16,16,128], index: 7, kind: output, shape index: {}]
  %s8 = sld [smem:[#allocation0]]
  $region61: #{bottleneck_forward.1} parent=0
    _
  %s10 = ssub.s32 1, %s8
  %s11 = scalar_select 0, %s10, %s8
  loop: start=0, step=1, limit=10
  $region2: #{bottleneck_forward.1} parent=0 // loop_pre_header
    _
  $region3: #{bottleneck_forward.1} parent=0 // loop_header
    %s13 = sphi 0, %s17
    %p14 = scmp.ge.s32.totalorder %s13, 10
    %s20 = sphi 0, %s32
    %s21 = sphi 0, %s28
    %s22 = sphi 0, %s20
    %s23 = sphi 0, %s21
    %s24 = sphi 0, %s22
    %s25 = sphi 0, %s23
    %s35 = sphi 0, %s37
    %s38 = sphi 0, %s35
    %s39 = sphi 0, %s38
    %s55 = sphi 0, %s39
    %s59 = sphi 0, %s59
    %s61 = sphi 0, %s59
    %s62 = sphi 0, %s61
    %s76 = sphi 0, %s62
    %s80 = sphi 0, %s80
    %s82 = sphi 0, %s80
    %s83 = sphi 0, %s82
    %s97 = sphi 0, %s83
    %s101 = sphi 0, %s101
    %s103 = sphi 0, %s101
    %s104 = sphi 0, %s103
    %s118 = sphi 0, %s104
    %s122 = sphi 0, %s122
    %s124 = sphi 0, %s122
    %s125 = sphi 0, %s124
    %s139 = sphi 0, %s125
    %s143 = sphi 0, %s143
    %s145 = sphi 0, %s143
    %s146 = sphi 0, %s145
    %s160 = sphi 0, %s146
    %s164 = sphi 0, %s164
    %s166 = sphi 0, %s164
    %s167 = sphi 0, %s166
    %s181 = sphi 0, %s167
    %s189 = sphi 0, %s191
    %s192 = sphi 0, %s189
    %s193 = sphi 0, %s192
    %s209 = sphi 0, %s193
  $region4: #{bottleneck_forward.1} parent=0 // loop_header_branch
    %16 = sbr.rel (%p14) target = $region8
  $region5: #{bottleneck_forward.1} parent=0 // loop_body
    %s18 = ssub.s32 %s13, 1
    %s19 = ssub.s32 %s13, 2
    %s26 = sadd.s32 1, %s21
    %p27 = scmp.ge.s32.totalorder %s26, 4
    %s28 = scalar_select %p27, 0, %s26
    %s29 = sadd.s32 1, %s20
    %s30 = scalar_select %p27, %s29, %s20
    %p31 = scmp.ge.s32.totalorder %s30, 2
    %s32 = scalar_select %p31, 0, %s30
    %s33 = ssub.s32 %s20, %s32
    %p34 = scmp.eq.s32.totalorder %s33, 0
    %s36 = sadd.s32 %s35, 1
    %s37 = scalar_select %p34, %s35, %s36
    %p40 = pneg %p34
    %p41 = scmp.eq.s32.totalorder %s13, 7
    %p42 = por %p40, %p41
    %p43 = scmp.ne.s32.totalorder %s35, %s38
    %p44 = scmp.eq.s32.totalorder %s13, 0
    %p45 = por %p43, %p44
    %p46 = scmp.ne.s32.totalorder %s35, %s38
    %p47 = scmp.eq.s32.totalorder %s18, 7
    %p48 = por %p46, %p47
    %p49 = scmp.ne.s32.totalorder %s38, %s39
    %p50 = scmp.eq.s32.totalorder %s18, 0
    %p51 = por %p49, %p50
    %p52 = scmp.ne.s32.totalorder %s38, %s39
    %p53 = scmp.eq.s32.totalorder %s19, 7
    %p54 = por %p52, %p53
    %p56 = scmp.ne.s32.totalorder %s39, %s55
    %p57 = scmp.eq.s32.totalorder %s19, 0
    %p58 = por %p56, %p57
    %s60 = sadd.s32 %s59, 1
    %p63 = scmp.eq.s32.totalorder %s13, 7
    %p64 = scmp.ne.s32.totalorder %s59, %s61
    %p65 = scmp.eq.s32.totalorder %s13, 0
    %p66 = por %p64, %p65
    %p67 = scmp.ne.s32.totalorder %s59, %s61
    %p68 = scmp.eq.s32.totalorder %s18, 7
    %p69 = por %p67, %p68
    %p70 = scmp.ne.s32.totalorder %s61, %s62
    %p71 = scmp.eq.s32.totalorder %s18, 0
    %p72 = por %p70, %p71
    %p73 = scmp.ne.s32.totalorder %s61, %s62
    %p74 = scmp.eq.s32.totalorder %s19, 7
    %p75 = por %p73, %p74
    %p77 = scmp.ne.s32.totalorder %s62, %s76
    %p78 = scmp.eq.s32.totalorder %s19, 0
    %p79 = por %p77, %p78
    %s81 = sadd.s32 %s80, 1
    %p84 = scmp.eq.s32.totalorder %s13, 7
    %p85 = scmp.ne.s32.totalorder %s80, %s82
    %p86 = scmp.eq.s32.totalorder %s13, 0
    %p87 = por %p85, %p86
    %p88 = scmp.ne.s32.totalorder %s80, %s82
    %p89 = scmp.eq.s32.totalorder %s18, 7
    %p90 = por %p88, %p89
    %p91 = scmp.ne.s32.totalorder %s82, %s83
    %p92 = scmp.eq.s32.totalorder %s18, 0
    %p93 = por %p91, %p92
    %p94 = scmp.ne.s32.totalorder %s82, %s83
    %p95 = scmp.eq.s32.totalorder %s19, 7
    %p96 = por %p94, %p95
    %p98 = scmp.ne.s32.totalorder %s83, %s97
    %p99 = scmp.eq.s32.totalorder %s19, 0
    %p100 = por %p98, %p99
    %s102 = sadd.s32 %s101, 1
    %p105 = scmp.eq.s32.totalorder %s13, 7
    %p106 = scmp.ne.s32.totalorder %s101, %s103
    %p107 = scmp.eq.s32.totalorder %s13, 0
    %p108 = por %p106, %p107
    %p109 = scmp.ne.s32.totalorder %s101, %s103
    %p110 = scmp.eq.s32.totalorder %s18, 7
    %p111 = por %p109, %p110
    %p112 = scmp.ne.s32.totalorder %s103, %s104
    %p113 = scmp.eq.s32.totalorder %s18, 0
    %p114 = por %p112, %p113
    %p115 = scmp.ne.s32.totalorder %s103, %s104
    %p116 = scmp.eq.s32.totalorder %s19, 7
    %p117 = por %p115, %p116
    %p119 = scmp.ne.s32.totalorder %s104, %s118
    %p120 = scmp.eq.s32.totalorder %s19, 0
    %p121 = por %p119, %p120
    %s123 = sadd.s32 %s122, 1
    %p126 = scmp.eq.s32.totalorder %s13, 7
    %p127 = scmp.ne.s32.totalorder %s122, %s124
    %p128 = scmp.eq.s32.totalorder %s13, 0
    %p129 = por %p127, %p128
    %p130 = scmp.ne.s32.totalorder %s122, %s124
    %p131 = scmp.eq.s32.totalorder %s18, 7
    %p132 = por %p130, %p131
    %p133 = scmp.ne.s32.totalorder %s124, %s125
    %p134 = scmp.eq.s32.totalorder %s18, 0
    %p135 = por %p133, %p134
    %p136 = scmp.ne.s32.totalorder %s124, %s125
    %p137 = scmp.eq.s32.totalorder %s19, 7
    %p138 = por %p136, %p137
    %p140 = scmp.ne.s32.totalorder %s125, %s139
    %p141 = scmp.eq.s32.totalorder %s19, 0
    %p142 = por %p140, %p141
    %s144 = sadd.s32 %s143, 1
    %p147 = scmp.eq.s32.totalorder %s13, 7
    %p148 = scmp.ne.s32.totalorder %s143, %s145
    %p149 = scmp.eq.s32.totalorder %s13, 0
    %p150 = por %p148, %p149
    %p151 = scmp.ne.s32.totalorder %s143, %s145
    %p152 = scmp.eq.s32.totalorder %s18, 7
    %p153 = por %p151, %p152
    %p154 = scmp.ne.s32.totalorder %s145, %s146
    %p155 = scmp.eq.s32.totalorder %s18, 0
    %p156 = por %p154, %p155
    %p157 = scmp.ne.s32.totalorder %s145, %s146
    %p158 = scmp.eq.s32.totalorder %s19, 7
    %p159 = por %p157, %p158
    %p161 = scmp.ne.s32.totalorder %s146, %s160
    %p162 = scmp.eq.s32.totalorder %s19, 0
    %p163 = por %p161, %p162
    %s165 = sadd.s32 %s164, 1
    %p168 = scmp.eq.s32.totalorder %s13, 7
    %p169 = scmp.ne.s32.totalorder %s164, %s166
    %p170 = scmp.eq.s32.totalorder %s13, 0
    %p171 = por %p169, %p170
    %p172 = scmp.ne.s32.totalorder %s164, %s166
    %p173 = scmp.eq.s32.totalorder %s18, 7
    %p174 = por %p172, %p173
    %p175 = scmp.ne.s32.totalorder %s166, %s167
    %p176 = scmp.eq.s32.totalorder %s18, 0
    %p177 = por %p175, %p176
    %p178 = scmp.ne.s32.totalorder %s166, %s167
    %p179 = scmp.eq.s32.totalorder %s19, 7
    %p180 = por %p178, %p179
    %p182 = scmp.ne.s32.totalorder %s167, %s181
    %p183 = scmp.eq.s32.totalorder %s19, 0
    %p184 = por %p182, %p183
    %s185 = ssub.s32 %s20, %s32
    %s186 = ssub.s32 %s21, %s28
    %s187 = sor.u32 %s185, %s186
    %p188 = scmp.eq.s32.totalorder %s187, 0
    %s190 = sadd.s32 %s189, 1
    %s191 = scalar_select %p188, %s189, %s190
    %p194 = pneg %p188
    %p195 = scmp.eq.s32.totalorder %s13, 7
    %p196 = por %p194, %p195
    %p197 = scmp.ne.s32.totalorder %s189, %s192
    %p198 = scmp.eq.s32.totalorder %s13, 0
    %p199 = por %p197, %p198
    %p200 = scmp.ne.s32.totalorder %s189, %s192
    %p201 = scmp.eq.s32.totalorder %s18, 7
    %p202 = por %p200, %p201
    %p203 = scmp.ne.s32.totalorder %s192, %s193
    %p204 = scmp.eq.s32.totalorder %s18, 0
    %p205 = por %p203, %p204
    %p206 = scmp.ne.s32.totalorder %s192, %s193
    %p207 = scmp.eq.s32.totalorder %s19, 7
    %p208 = por %p206, %p207
    %p210 = scmp.ne.s32.totalorder %s193, %s209
    %p211 = scmp.eq.s32.totalorder %s19, 0
    %p212 = por %p210, %p211
    %p213 = scmp.le.s32.totalorder 1, %s13
    %p214 = scmp.lt.s32.totalorder %s13, 9
    %p215 = pnand %p213, %p214
    %p216 = pneg %p215
    // Predicated region
    $region9: #{bottleneck_forward.1} parent=5 // pred_check
      _
    $region10: #{bottleneck_forward.1} parent=5 // pred_check_branch
      %218 = sbr.rel (%p215) target = $region12
    $region11: #{bottleneck_forward.1} parent=5 // pred_region
      %s219 = ssub.s32 %s13, 1
      // Predicated region
      $region13: #{bottleneck_forward.1} parent=11 // pred_check
        %p220 = pneg %p72
      $region14: #{bottleneck_forward.1} parent=11 // pred_check_branch
        %222 = sbr.rel (%p220) target = $region16
      $region15: #{bottleneck_forward.1} parent=11 // pred_region
        _
      $region16: #{bottleneck_forward.1} parent=11 // pred_fallthru
        _
      // Predicated region
      $region17: #{bottleneck_forward.1} parent=11 // pred_check
        %p223 = pneg %p93
      $region18: #{bottleneck_forward.1} parent=11 // pred_check_branch
        %225 = sbr.rel (%p223) target = $region20
      $region19: #{bottleneck_forward.1} parent=11 // pred_region
        _
      $region20: #{bottleneck_forward.1} parent=11 // pred_fallthru
        _
      // Predicated region
      $region21: #{bottleneck_forward.1} parent=11 // pred_check
        %p226 = pneg %p114
      $region22: #{bottleneck_forward.1} parent=11 // pred_check_branch
        %228 = sbr.rel (%p226) target = $region24
      $region23: #{bottleneck_forward.1} parent=11 // pred_region
        _
      $region24: #{bottleneck_forward.1} parent=11 // pred_fallthru
        _
      // Predicated region
      $region25: #{bottleneck_forward.1} parent=11 // pred_check
        %p229 = pneg %p135
      $region26: #{bottleneck_forward.1} parent=11 // pred_check_branch
        %231 = sbr.rel (%p229) target = $region28
      $region27: #{bottleneck_forward.1} parent=11 // pred_region
        _
      $region28: #{bottleneck_forward.1} parent=11 // pred_fallthru
        _
      // Predicated region
      $region29: #{bottleneck_forward.1} parent=11 // pred_check
        %p232 = pneg %p156
      $region30: #{bottleneck_forward.1} parent=11 // pred_check_branch
        %234 = sbr.rel (%p232) target = $region32
      $region31: #{bottleneck_forward.1} parent=11 // pred_region
        _
      $region32: #{bottleneck_forward.1} parent=11 // pred_fallthru
        _
      // Predicated region
      $region33: #{bottleneck_forward.1} parent=11 // pred_check
        %p235 = pneg %p177
      $region34: #{bottleneck_forward.1} parent=11 // pred_check_branch
        %237 = sbr.rel (%p235) target = $region36
      $region35: #{bottleneck_forward.1} parent=11 // pred_region
        _
      $region36: #{bottleneck_forward.1} parent=11 // pred_fallthru
        _
    $region12: #{bottleneck_forward.1} parent=5 // pred_fallthru
      _
    %p238 = scmp.lt.s32.totalorder %s13, 8
    // Predicated region
    $region37: #{bottleneck_forward.1} parent=5 // pred_check
      %p239 = pneg %p238
    $region38: #{bottleneck_forward.1} parent=5 // pred_check_branch
      %241 = sbr.rel (%p239) target = $region40
    $region39: #{bottleneck_forward.1} parent=5 // pred_region
      // Predicated region
      $region41: #{bottleneck_forward.1} parent=39 // pred_check
        %p242 = pneg %p45
      $region42: #{bottleneck_forward.1} parent=39 // pred_check_branch
        %244 = sbr.rel (%p242) target = $region44
      $region43: #{bottleneck_forward.1} parent=39 // pred_region
        %p245 = scmp.lt.s32.totalorder %s20, 1
        %s246 = scalar_select %p245, %s20, 1
        %s247 = smul.addr %s246, 54
        %s248 = smul.addr %s247, 4
        %s249 = scalar_lea.vmem %s0, %s248
      $region44: #{bottleneck_forward.1} parent=39 // pred_fallthru
        _
    $region40: #{bottleneck_forward.1} parent=5 // pred_fallthru
      _
    %p250 = scmp.le.s32.totalorder 1, %s13
    %p251 = scmp.lt.s32.totalorder %s13, 9
    %p252 = pnand %p250, %p251
    %p253 = pneg %p252
    // Predicated region
    $region45: #{bottleneck_forward.1} parent=5 // pred_check
      _
    $region46: #{bottleneck_forward.1} parent=5 // pred_check_branch
      %255 = sbr.rel (%p252) target = $region48
    $region47: #{bottleneck_forward.1} parent=5 // pred_region
      %s256 = ssub.s32 %s13, 1
      %p257 = scmp.lt.s32.totalorder %s22, 1
      %s258 = scalar_select %p257, %s22, 1
      %s259 = smul.addr %s258, 54
      %s260 = smul.addr %s259, 4
      %s261 = scalar_lea.vmem %s0, %s260
      %p262 = pneg %p51
      %p263 = pneg %p48
      %p264 = pneg %p72
      %p265 = pneg %p69
      %p266 = pneg %p93
      %p267 = pneg %p90
      %p268 = pneg %p114
      %p269 = pneg %p111
      %p270 = pneg %p135
      %p271 = pneg %p132
      %p272 = pneg %p156
      %p273 = pneg %p153
      %p274 = pneg %p177
      %p275 = pneg %p174
      %p276 = pneg %p205
      %p277 = pneg %p202
      %s278 = smul.u32 4, %s23
      %p279 = scmp.lt.s32.totalorder %s22, 1
      %s280 = scalar_select %p279, %s22, 1
      %p281 = scmp.lt.s32.totalorder %s278, 15
      %s282 = scalar_select %p281, %s278, 15
      %s283 = smul.addr %s282, 2
      %s284 = smul.addr %s280, 32
      %s285 = sadd.s32 %s283, %s284
      %s286 = smul.addr %s285, 8
      %s287 = scalar_lea.vmem %s7, %s286
      %p288 = scmp.lt.s32.totalorder %s22, 1
      %s289 = scalar_select %p288, %s22, 1
      %s290 = smul.addr %s289, 54
      %s291 = smul.addr %s290, 4
      %s292 = scalar_lea.vmem %s0, %s291
      %s293 = smul.u32 4, %s23
      %p294 = scmp.lt.s32.totalorder %s22, 1
      %s295 = scalar_select %p294, %s22, 1
      %p296 = scmp.lt.s32.totalorder %s293, 15
      %s297 = scalar_select %p296, %s293, 15
      %s298 = smul.addr %s297, 2
      %s299 = smul.addr %s295, 32
      %s300 = sadd.s32 %s298, %s299
      %s301 = smul.addr %s300, 8
      %s302 = scalar_lea.vmem %s7, %s301
      %s303 = smul.u32 4, %s23
      %s305 = smul.u32 %s23, 4
      %s306 = smul.u32 %s305, 3
      %s307 = smul.addr %s306, 4
      %s308 = scalar_lea.vmem %s292, %s307
      %v309 = vld [vmem:[%s308] sm:$0xf]
      %v310 = vld [vmem:[%s308 + $0x4] sm:$0xf]
      %v311 = vld [vmem:[%s308 + $0x8] sm:$0xf]
      %v312 = vld [vmem:[%s308 + $0xc] sm:$0xf]
      %v313 = vld [vmem:[%s308 + $0x10] sm:$0xf]
      %v314 = vld [vmem:[%s308 + $0x14] sm:$0xf]
      %v315 = vld [vmem:[%s308 + $0x18] sm:$0xf]
      %v316 = vld [vmem:[%s308 + $0x1c] sm:$0xf]
      %v317 = vld [vmem:[%s308 + $0x20] sm:$0xf]
      %v318 = vld [vmem:[%s308 + $0x24] sm:$0xf]
      %v319 = vld [vmem:[%s308 + $0x28] sm:$0xf]
      %v320 = vld [vmem:[%s308 + $0x2c] sm:$0xf]
      %v321 = vld [vmem:[%s308 + $0x30] sm:$0xf]
      %v322 = vld [vmem:[%s308 + $0x34] sm:$0xf]
      %v323 = vld [vmem:[%s308 + $0x38] sm:$0xf]
      %v324 = vld [vmem:[%s308 + $0x3c] sm:$0xf]
      %v325 = vld [vmem:[%s308 + $0x40] sm:$0xf]
      %v326 = vld [vmem:[%s308 + $0x44] sm:$0xf]
      %v327 = vld [vmem:[%s1] sm:$0xf]
      %v328 = vld [vmem:[%s1 + $0x4] sm:$0xf]
      %v329 = vld [vmem:[%s2] sm:$0x1]
      %v331 = vlaneseq
      %v332 = vshrl.u32 %v331, 7
      %v333 = vsub.s32 0, %v332
      %v334 = vrot.slane %v329, %v333
      %v354 = vunpack.c.l.b16 %v309
      %v355 = vunpack.c.l.b16 %v310
      %v356 = vunpack.c.l.b16 %v311
      %v357 = vunpack.c.l.b16 %v312
      %v358 = vunpack.c.l.b16 %v313
      %v359 = vunpack.c.l.b16 %v314
      %v360 = vunpack.c.l.b16 %v315
      %v361 = vunpack.c.l.b16 %v316
      %v362 = vunpack.c.l.b16 %v317
      %v363 = vunpack.c.l.b16 %v318
      %v364 = vunpack.c.l.b16 %v319
      %v365 = vunpack.c.l.b16 %v320
      %v366 = vunpack.c.l.b16 %v321
      %v367 = vunpack.c.l.b16 %v322
      %v368 = vunpack.c.l.b16 %v323
      %v369 = vunpack.c.l.b16 %v324
      %v370 = vunpack.c.l.b16 %v325
      %v371 = vunpack.c.l.b16 %v326
      %v372 = vpack.c.b16 %v355, %v354
      %v373 = vpack.c.b16 %v357, %v356
      %v374 = vpack.c.b16 %v359, %v358
      %v375 = vpack.c.b16 %v361, %v360
      %v376 = vpack.c.b16 %v363, %v362
      %v377 = vpack.c.b16 %v365, %v364
      %v378 = vpack.c.b16 %v367, %v366
      %v379 = vpack.c.b16 %v369, %v368
      %v380 = vpack.c.b16 %v371, %v370
      %v383 = vunpack.c.l.b16 %v327
      %v384 = vunpack.c.l.b16 %v328
      %v385 = vpack.c.b16 %v384, %v383
      %vm387 = vcmask 130048
      %v389 = vsel %vm387, %v372, 0
      %v392 = vsel %vm387, %v373, 0
      %v395 = vsel %vm387, %v374, 0
      %v398 = vsel %vm387, %v375, 0
      %v401 = vsel %vm387, %v376, 0
      %v404 = vsel %vm387, %v377, 0
      %v407 = vsel %vm387, %v378, 0
      %v410 = vsel %vm387, %v379, 0
      %v413 = vsel %vm387, %v380, 0
      %415 = vmatprep.subr.bf16.mxu0 0
      %416 = vmatpush1.bf16.msra.mxu0 0
      %417 = vmatprep.subr.bf16.mxu0 0
      %418 = vmatpush1.bf16.msra.mxu0 0
      %419 = vmatprep.subr.bf16.mxu0 0
      %420 = vmatpush1.bf16.msra.mxu0 0
      %421 = vmatprep.subr.bf16.mxu0 0
      %422 = vmatpush1.bf16.msra.mxu0 0
      %423 = vmatprep.subr.bf16.mxu0 0
      %424 = vmatpush1.bf16.msra.mxu0 0
      %425 = vmatprep.subr.bf16.mxu0 0
      %426 = vmatpush1.bf16.msra.mxu0 0
      %427 = vmatprep.subr.bf16.mxu0 0
      %428 = vmatpush1.bf16.msra.mxu0 0
      %429 = vmatprep.subr.bf16.mxu0 0
      %430 = vmatpush1.bf16.msra.mxu0 %v385
      %431 = vmatprep.subr.bf16.mxu0 0
      %432 = vmatpush2.bf16.msra.mxu0 0
      %433 = vmatprep.subr.bf16.mxu0 0
      %434 = vmatpush2.bf16.msra.mxu0 0
      %435 = vmatprep.subr.bf16.mxu0 0
      %436 = vmatpush2.bf16.msra.mxu0 0
      %437 = vmatprep.subr.bf16.mxu0 0
      %438 = vmatpush2.bf16.msra.mxu0 0
      %439 = vmatprep.subr.bf16.mxu0 0
      %440 = vmatpush2.bf16.msra.mxu0 0
      %441 = vmatprep.subr.bf16.mxu0 0
      %442 = vmatpush2.bf16.msra.mxu0 0
      %443 = vmatprep.subr.bf16.mxu0 0
      %444 = vmatpush2.bf16.msra.mxu0 0
      %445 = vmatprep.subr.bf16.mxu0 0
      %446 = vmatpush2.bf16.msra.mxu0 0
      %447 = vmatprep.mubr.bf16.mxu0 0
      %448 = vmatmul.mubr.bf16.gmra.mxu0 %v389
      %v449 = vpop.f32.mrf.mxu0
      %v450 = vadd.f32 %v334, %v449
      %v451 = vpop.f32.mrf.mxu0
      %v452 = vpop.f32.mrf.mxu0
      %v453 = vadd.f32 %v334, %v452
      %v454 = vpop.f32.mrf.mxu0
      %455 = vmatprep.mubr.bf16.mxu0 0
      %456 = vmatmul.mubr.bf16.gmra.mxu0 %v392
      %v457 = vpop.f32.mrf.mxu0
      %v458 = vadd.f32 %v334, %v457
      %v459 = vpop.f32.mrf.mxu0
      %v460 = vpop.f32.mrf.mxu0
      %v461 = vadd.f32 %v334, %v460
      %v462 = vpop.f32.mrf.mxu0
      %463 = vmatprep.mubr.bf16.mxu0 0
      %464 = vmatmul.mubr.bf16.gmra.mxu0 %v395
      %v465 = vpop.f32.mrf.mxu0
      %v466 = vadd.f32 %v334, %v465
      %v467 = vpop.f32.mrf.mxu0
      %v468 = vpop.f32.mrf.mxu0
      %v469 = vadd.f32 %v334, %v468
      %v470 = vpop.f32.mrf.mxu0
      %471 = vmatprep.mubr.bf16.mxu0 0
      %472 = vmatmul.mubr.bf16.gmra.mxu0 %v398
      %v473 = vpop.f32.mrf.mxu0
      %v474 = vadd.f32 %v334, %v473
      %v475 = vpop.f32.mrf.mxu0
      %v476 = vpop.f32.mrf.mxu0
      %v477 = vadd.f32 %v334, %v476
      %v478 = vpop.f32.mrf.mxu0
      %479 = vmatprep.mubr.bf16.mxu0 0
      %480 = vmatmul.mubr.bf16.gmra.mxu0 %v401
      %v481 = vpop.f32.mrf.mxu0
      %v482 = vadd.f32 %v334, %v481
      %v483 = vpop.f32.mrf.mxu0
      %v484 = vpop.f32.mrf.mxu0
      %v485 = vadd.f32 %v334, %v484
      %v486 = vpop.f32.mrf.mxu0
      %487 = vmatprep.mubr.bf16.mxu0 0
      %488 = vmatmul.mubr.bf16.gmra.mxu0 %v404
      %v489 = vpop.f32.mrf.mxu0
      %v490 = vadd.f32 %v334, %v489
      %v491 = vpop.f32.mrf.mxu0
      %v492 = vpop.f32.mrf.mxu0
      %v493 = vadd.f32 %v334, %v492
      %v494 = vpop.f32.mrf.mxu0
      %495 = vmatprep.mubr.bf16.mxu0 0
      %496 = vmatmul.mubr.bf16.gmra.mxu0 %v407
      %v497 = vpop.f32.mrf.mxu0
      %v498 = vadd.f32 %v334, %v497
      %v499 = vpop.f32.mrf.mxu0
      %v500 = vpop.f32.mrf.mxu0
      %v501 = vadd.f32 %v334, %v500
      %v502 = vpop.f32.mrf.mxu0
      %503 = vmatprep.mubr.bf16.mxu0 0
      %504 = vmatmul.mubr.bf16.gmra.mxu0 %v410
      %v505 = vpop.f32.mrf.mxu0
      %v506 = vadd.f32 %v334, %v505
      %v507 = vpop.f32.mrf.mxu0
      %v508 = vpop.f32.mrf.mxu0
      %v509 = vadd.f32 %v334, %v508
      %v510 = vpop.f32.mrf.mxu0
      %511 = vmatprep.mubr.bf16.mxu0 0
      %512 = vmatmul.mubr.bf16.gmra.mxu0 %v413
      %v513 = vpop.f32.mrf.mxu0
      %v514 = vadd.f32 %v334, %v513
      %v515 = vpop.f32.mrf.mxu0
      %v516 = vpop.f32.mrf.mxu0
      %v517 = vadd.f32 %v334, %v516
      %v518 = vpop.f32.mrf.mxu0
      %519 = vdwg.mxu0
      %v520 = vmax.f32 %v450, 0.0
      %v521 = vmax.f32 %v453, 0.0
      %v522 = vmax.f32 %v458, 0.0
      %v523 = vmax.f32 %v461, 0.0
      %v524 = vmax.f32 %v466, 0.0
      %v525 = vmax.f32 %v469, 0.0
      %v526 = vmax.f32 %v474, 0.0
      %v527 = vmax.f32 %v477, 0.0
      %v528 = vmax.f32 %v482, 0.0
      %v529 = vmax.f32 %v485, 0.0
      %v530 = vmax.f32 %v490, 0.0
      %v531 = vmax.f32 %v493, 0.0
      %v532 = vmax.f32 %v498, 0.0
      %v533 = vmax.f32 %v501, 0.0
      %v534 = vmax.f32 %v506, 0.0
      %v535 = vmax.f32 %v509, 0.0
      %v536 = vmax.f32 %v514, 0.0
      %v537 = vmax.f32 %v517, 0.0
      %v538 = vstv %s305
      %v539 = vadd.s32 %v538, 1
      %v540 = vadd.s32 %v538, 2
      %v541 = vadd.s32 %v538, 3
      %v542 = vadd.s32 %v538, 4
      %v543 = vadd.s32 %v538, 5
      %v544 = vlaneseq
      %v545 = vshrl.u32 %v544, 7
      %v546 = vadd.s32 %v545, 8
      %v547 = vadd.s32 %v545, 16
      %vm548 = vcmp.ge.s32.totalorder %v538, 1
      %vm549 = vcmp.ge.s32.totalorder %v539, 1
      %vm550 = vcmp.ge.s32.totalorder %v540, 1
      %vm551 = vcmp.ge.s32.totalorder %v541, 1
      %vm552 = vcmp.ge.s32.totalorder %v542, 1
      %vm553 = vcmp.ge.s32.totalorder %v543, 1
      %vm554 = vcmp.le.s32.totalorder %v538, 16
      %vm555 = vcmp.le.s32.totalorder %v539, 16
      %vm556 = vcmp.le.s32.totalorder %v540, 16
      %vm557 = vcmp.le.s32.totalorder %v541, 16
      %vm558 = vcmp.le.s32.totalorder %v542, 16
      %vm559 = vcmp.le.s32.totalorder %v543, 16
      %vm560 = vmand %vm548, %vm554
      %vm561 = vmand %vm549, %vm555
      %vm562 = vmand %vm550, %vm556
      %vm563 = vmand %vm551, %vm557
      %vm564 = vmand %vm552, %vm558
      %vm565 = vmand %vm553, %vm559
      %vm566 = vcmp.ge.s32.totalorder %v545, 1
      %vm567 = vcmp.ge.s32.totalorder %v546, 1
      %vm568 = vcmp.ge.s32.totalorder %v547, 1
      %vm569 = vmand %vm560, %vm566
      %vm570 = vmand %vm560, %vm567
      %vm571 = vmand %vm560, %vm568
      %vm572 = vmand %vm561, %vm566
      %vm573 = vmand %vm561, %vm567
      %vm574 = vmand %vm561, %vm568
      %vm575 = vmand %vm562, %vm566
      %vm576 = vmand %vm562, %vm567
      %vm577 = vmand %vm562, %vm568
      %vm578 = vmand %vm563, %vm566
      %vm579 = vmand %vm563, %vm567
      %vm580 = vmand %vm563, %vm568
      %vm581 = vmand %vm564, %vm566
      %vm582 = vmand %vm564, %vm567
      %vm583 = vmand %vm564, %vm568
      %vm584 = vmand %vm565, %vm566
      %vm585 = vmand %vm565, %vm567
      %vm586 = vmand %vm565, %vm568
      %vm587 = vcmp.le.s32.totalorder %v545, 16
      %vm588 = vcmp.le.s32.totalorder %v546, 16
      %vm589 = vcmp.le.s32.totalorder %v547, 16
      %vm590 = vmand %vm569, %vm587
      %vm591 = vmand %vm570, %vm588
      %vm592 = vmand %vm571, %vm589
      %vm593 = vmand %vm572, %vm587
      %vm594 = vmand %vm573, %vm588
      %vm595 = vmand %vm574, %vm589
      %vm596 = vmand %vm575, %vm587
      %vm597 = vmand %vm576, %vm588
      %vm598 = vmand %vm577, %vm589
      %vm599 = vmand %vm578, %vm587
      %vm600 = vmand %vm579, %vm588
      %vm601 = vmand %vm580, %vm589
      %vm602 = vmand %vm581, %vm587
      %vm603 = vmand %vm582, %vm588
      %vm604 = vmand %vm583, %vm589
      %vm605 = vmand %vm584, %vm587
      %vm606 = vmand %vm585, %vm588
      %vm607 = vmand %vm586, %vm589
      %v608 = vsel %vm590, 1, 0
      %v609 = vsel %vm591, 1, 0
      %v610 = vsel %vm592, 1, 0
      %v611 = vsel %vm593, 1, 0
      %v612 = vsel %vm594, 1, 0
      %v613 = vsel %vm595, 1, 0
      %v614 = vsel %vm596, 1, 0
      %v615 = vsel %vm597, 1, 0
      %v616 = vsel %vm598, 1, 0
      %v617 = vsel %vm599, 1, 0
      %v618 = vsel %vm600, 1, 0
      %v619 = vsel %vm601, 1, 0
      %v620 = vsel %vm602, 1, 0
      %v621 = vsel %vm603, 1, 0
      %v622 = vsel %vm604, 1, 0
      %v623 = vsel %vm605, 1, 0
      %v624 = vsel %vm606, 1, 0
      %v625 = vsel %vm607, 1, 0
      %vm626 = vcmp.eq.s32.totalorder %v608, 1
      %vm627 = vcmp.eq.s32.totalorder %v609, 1
      %vm628 = vcmp.eq.s32.totalorder %v610, 1
      %vm629 = vcmp.eq.s32.totalorder %v611, 1
      %vm630 = vcmp.eq.s32.totalorder %v612, 1
      %vm631 = vcmp.eq.s32.totalorder %v613, 1
      %vm632 = vcmp.eq.s32.totalorder %v614, 1
      %vm633 = vcmp.eq.s32.totalorder %v615, 1
      %vm634 = vcmp.eq.s32.totalorder %v616, 1
      %vm635 = vcmp.eq.s32.totalorder %v617, 1
      %vm636 = vcmp.eq.s32.totalorder %v618, 1
      %vm637 = vcmp.eq.s32.totalorder %v619, 1
      %vm638 = vcmp.eq.s32.totalorder %v620, 1
      %vm639 = vcmp.eq.s32.totalorder %v621, 1
      %vm640 = vcmp.eq.s32.totalorder %v622, 1
      %vm641 = vcmp.eq.s32.totalorder %v623, 1
      %vm642 = vcmp.eq.s32.totalorder %v624, 1
      %vm643 = vcmp.eq.s32.totalorder %v625, 1
      %v644 = vsel %vm626, %v520, 0.0
      %v645 = vsel %vm627, %v521, 0.0
      %v646 = vsel %vm628, %v522, 0.0
      %v647 = vsel %vm629, %v523, 0.0
      %v648 = vsel %vm630, %v524, 0.0
      %v649 = vsel %vm631, %v525, 0.0
      %v650 = vsel %vm632, %v526, 0.0
      %v651 = vsel %vm633, %v527, 0.0
      %v652 = vsel %vm634, %v528, 0.0
      %v653 = vsel %vm635, %v529, 0.0
      %v654 = vsel %vm636, %v530, 0.0
      %v655 = vsel %vm637, %v531, 0.0
      %v656 = vsel %vm638, %v532, 0.0
      %v657 = vsel %vm639, %v533, 0.0
      %v658 = vsel %vm640, %v534, 0.0
      %v659 = vsel %vm641, %v535, 0.0
      %v660 = vsel %vm642, %v536, 0.0
      %v661 = vsel %vm643, %v537, 0.0
      %v662 = vpack.c.bf16 %v645, %v644
      %v663 = vpack.c.bf16 %v646, %v646
      %v664 = vpack.c.bf16 %v648, %v647
      %v665 = vpack.c.bf16 %v649, %v649
      %v666 = vpack.c.bf16 %v651, %v650
      %v667 = vpack.c.bf16 %v652, %v652
      %v668 = vpack.c.bf16 %v654, %v653
      %v669 = vpack.c.bf16 %v655, %v655
      %v670 = vpack.c.bf16 %v657, %v656
      %v671 = vpack.c.bf16 %v658, %v658
      %v672 = vpack.c.bf16 %v660, %v659
      %v673 = vpack.c.bf16 %v661, %v661
      %v686 = vunpack.c.l.b16 %v662
      %v687 = vunpack.c.h.b16 %v662
      %v688 = vunpack.c.l.b16 %v663
      %v689 = vunpack.c.l.b16 %v664
      %v690 = vunpack.c.h.b16 %v664
      %v691 = vunpack.c.l.b16 %v665
      %v692 = vunpack.c.l.b16 %v666
      %v693 = vunpack.c.h.b16 %v666
      %v694 = vunpack.c.l.b16 %v667
      %v695 = vunpack.c.l.b16 %v668
      %v696 = vunpack.c.h.b16 %v668
      %v697 = vunpack.c.l.b16 %v669
      %v698 = vunpack.c.l.b16 %v670
      %v699 = vunpack.c.h.b16 %v670
      %v700 = vunpack.c.l.b16 %v671
      %v701 = vunpack.c.l.b16 %v672
      %v702 = vunpack.c.h.b16 %v672
      %v703 = vunpack.c.l.b16 %v673
      %v704 = vpack.c.b16 %v686, %v686
      %v705 = vpack.c.b16 %v687, %v687
      %v706 = vpack.c.b16 %v688, %v688
      %v707 = vpack.c.b16 %v689, %v689
      %v708 = vpack.c.b16 %v690, %v690
      %v709 = vpack.c.b16 %v691, %v691
      %v710 = vpack.c.b16 %v692, %v692
      %v711 = vpack.c.b16 %v693, %v693
      %v712 = vpack.c.b16 %v694, %v694
      %v713 = vpack.c.b16 %v695, %v695
      %v714 = vpack.c.b16 %v696, %v696
      %v715 = vpack.c.b16 %v697, %v697
      %v716 = vpack.c.b16 %v698, %v698
      %v717 = vpack.c.b16 %v699, %v699
      %v718 = vpack.c.b16 %v700, %v700
      %v719 = vpack.c.b16 %v701, %v701
      %v720 = vpack.c.b16 %v702, %v702
      %v721 = vpack.c.b16 %v703, %v703
      %740 = vst [vmem:[#allocation2] sm:$0xf] %v704
      %741 = vst [vmem:[#allocation2 + $0x4] sm:$0xf] %v705
      %742 = vst [vmem:[#allocation2 + $0x8] sm:$0xf] %v706
      %743 = vst [vmem:[#allocation2 + $0xc] sm:$0xf] %v707
      %744 = vst [vmem:[#allocation2 + $0x10] sm:$0xf] %v708
      %745 = vst [vmem:[#allocation2 + $0x14] sm:$0xf] %v709
      %746 = vst [vmem:[#allocation2 + $0x18] sm:$0xf] %v710
      %747 = vst [vmem:[#allocation2 + $0x1c] sm:$0xf] %v711
      %748 = vst [vmem:[#allocation2 + $0x20] sm:$0xf] %v712
      %749 = vst [vmem:[#allocation2 + $0x24] sm:$0xf] %v713
      %750 = vst [vmem:[#allocation2 + $0x28] sm:$0xf] %v714
      %751 = vst [vmem:[#allocation2 + $0x2c] sm:$0xf] %v715
      %752 = vst [vmem:[#allocation2 + $0x30] sm:$0xf] %v716
      %753 = vst [vmem:[#allocation2 + $0x34] sm:$0xf] %v717
      %754 = vst [vmem:[#allocation2 + $0x38] sm:$0xf] %v718
      %755 = vst [vmem:[#allocation2 + $0x3c] sm:$0xf] %v719
      %756 = vst [vmem:[#allocation2 + $0x40] sm:$0xf] %v720
      %757 = vst [vmem:[#allocation2 + $0x44] sm:$0xf] %v721
      %v758 = vld [vmem:[#allocation2] sm:$0xf]
      %v759 = vld [vmem:[#allocation2 + $0x4] sm:$0xf]
      %v760 = vld [vmem:[#allocation2 + $0xc] sm:$0xf]
      %v761 = vld [vmem:[#allocation2 + $0x10] sm:$0xf]
      %v762 = vld [vmem:[#allocation2 + $0x18] sm:$0xf]
      %v763 = vld [vmem:[#allocation2 + $0x1c] sm:$0xf]
      %v764 = vld [vmem:[#allocation2 + $0x24] sm:$0xf]
      %v765 = vld [vmem:[#allocation2 + $0x28] sm:$0xf]
      %v766 = vld [vmem:[#allocation2 + $0x8] sm:$0x1]
      %v767 = vld [vmem:[#allocation2 + $0x14] sm:$0x1]
      %v768 = vld [vmem:[#allocation2 + $0x20] sm:$0x1]
      %v769 = vld [vmem:[#allocation2 + $0x2c] sm:$0x1]
      %v770 = vld [vmem:[#allocation2] sm:$0xe]
      %v771 = vld [vmem:[#allocation2 + $0xc] sm:$0xe]
      %v772 = vld [vmem:[#allocation2 + $0x18] sm:$0xe]
      %v773 = vld [vmem:[#allocation2 + $0x24] sm:$0xe]
      %v782 = vunpack.c.l.b16 %v758
      %v783 = vunpack.c.l.b16 %v759
      %v784 = vunpack.c.l.b16 %v760
      %v785 = vunpack.c.l.b16 %v761
      %v786 = vunpack.c.l.b16 %v762
      %v787 = vunpack.c.l.b16 %v763
      %v788 = vunpack.c.l.b16 %v764
      %v789 = vunpack.c.l.b16 %v765
      %v790 = vpack.c.b16 %v783, %v782
      %v791 = vpack.c.b16 %v785, %v784
      %v792 = vpack.c.b16 %v787, %v786
      %v793 = vpack.c.b16 %v789, %v788
      %v802 = vunpack.c.l.b16 %v766
      %v803 = vunpack.c.l.b16 %v767
      %v804 = vunpack.c.l.b16 %v768
      %v805 = vunpack.c.l.b16 %v769
      %v806 = vpack.c.b16 %v802, %v802
      %v807 = vpack.c.b16 %v803, %v803
      %v808 = vpack.c.b16 %v804, %v804
      %v809 = vpack.c.b16 %v805, %v805
      %vm810 = vsmask.f32 7424
      %v812 = vshrl.u32 %v790, 16
      %v814 = vshll.u32 %v790, 16
      %v816 = vrot.slane %v814, 1
      %v817 = vor.u32 %v812, %v816
      %v819 = vshll.u32 %v806, 16
      %v821 = vrot.slane %v819, 1
      %v822 = vsel %vm810, %v817, %v821
      %v824 = vshrl.u32 %v791, 16
      %v826 = vshll.u32 %v791, 16
      %v828 = vrot.slane %v826, 1
      %v829 = vor.u32 %v824, %v828
      %v831 = vshll.u32 %v807, 16
      %v833 = vrot.slane %v831, 1
      %v834 = vsel %vm810, %v829, %v833
      %v836 = vshrl.u32 %v792, 16
      %v838 = vshll.u32 %v792, 16
      %v840 = vrot.slane %v838, 1
      %v841 = vor.u32 %v836, %v840
      %v843 = vshll.u32 %v808, 16
      %v845 = vrot.slane %v843, 1
      %v846 = vsel %vm810, %v841, %v845
      %v848 = vshrl.u32 %v793, 16
      %v850 = vshll.u32 %v793, 16
      %v852 = vrot.slane %v850, 1
      %v853 = vor.u32 %v848, %v852
      %v855 = vshll.u32 %v809, 16
      %v857 = vrot.slane %v855, 1
      %v858 = vsel %vm810, %v853, %v857
      %v867 = vunpack.c.l.b16 %v770
      %v868 = vunpack.c.l.b16 %v771
      %v869 = vunpack.c.l.b16 %v772
      %v870 = vunpack.c.l.b16 %v773
      %v871 = vpack.c.b16 %v783, %v867
      %v872 = vpack.c.b16 %v785, %v868
      %v873 = vpack.c.b16 %v787, %v869
      %v874 = vpack.c.b16 %v789, %v870
      %vm875 = vcmask 1046528
      %v876 = vrot.slane %v871, 1
      %v877 = vrot.slane %v806, 1
      %v878 = vsel %vm875, %v876, %v877
      %v879 = vrot.slane %v872, 1
      %v880 = vrot.slane %v807, 1
      %v881 = vsel %vm875, %v879, %v880
      %v882 = vrot.slane %v873, 1
      %v883 = vrot.slane %v808, 1
      %v884 = vsel %vm875, %v882, %v883
      %v885 = vrot.slane %v874, 1
      %v886 = vrot.slane %v809, 1
      %v887 = vsel %vm875, %v885, %v886
      %v892 = vld [vmem:[%s3] sm:$0xf]
      %v893 = vld [vmem:[%s3 + $0x4] sm:$0xf]
      %v894 = vld [vmem:[%s3 + $0x8] sm:$0xf]
      %v895 = vld [vmem:[%s3 + $0xc] sm:$0xf]
      %v896 = vld [vmem:[%s3 + $0x10] sm:$0xf]
      %v897 = vld [vmem:[%s3 + $0x14] sm:$0xf]
      %v898 = vld [vmem:[%s3 + $0x18] sm:$0xf]
      %v899 = vld [vmem:[%s3 + $0x1c] sm:$0xf]
      %v900 = vld [vmem:[%s3 + $0x20] sm:$0xf]
      %v901 = vld [vmem:[%s3 + $0x24] sm:$0xf]
      %v902 = vld [vmem:[%s3 + $0x28] sm:$0xf]
      %v903 = vld [vmem:[%s3 + $0x2c] sm:$0xf]
      %v904 = vld [vmem:[%s3 + $0x30] sm:$0xf]
      %v905 = vld [vmem:[%s3 + $0x34] sm:$0xf]
      %v906 = vld [vmem:[%s3 + $0x38] sm:$0xf]
      %v907 = vld [vmem:[%s3 + $0x3c] sm:$0xf]
      %v908 = vld [vmem:[%s3 + $0x40] sm:$0xf]
      %v909 = vld [vmem:[%s3 + $0x44] sm:$0xf]
      %v910 = vld [vmem:[%s3 + $0x48] sm:$0xf]
      %v911 = vld [vmem:[%s3 + $0x4c] sm:$0xf]
      %v912 = vld [vmem:[%s3 + $0x50] sm:$0xf]
      %v913 = vld [vmem:[%s3 + $0x54] sm:$0xf]
      %v914 = vld [vmem:[%s3 + $0x58] sm:$0xf]
      %v915 = vld [vmem:[%s3 + $0x5c] sm:$0xf]
      %v916 = vld [vmem:[%s3 + $0x60] sm:$0xf]
      %v917 = vld [vmem:[%s3 + $0x64] sm:$0xf]
      %v918 = vld [vmem:[%s3 + $0x68] sm:$0xf]
      %v919 = vld [vmem:[%s3 + $0x6c] sm:$0xf]
      %v920 = vld [vmem:[%s3 + $0x70] sm:$0xf]
      %v921 = vld [vmem:[%s3 + $0x74] sm:$0xf]
      %v922 = vld [vmem:[%s3 + $0x78] sm:$0xf]
      %v923 = vld [vmem:[%s3 + $0x7c] sm:$0xf]
      %v924 = vld [vmem:[%s3 + $0x80] sm:$0xf]
      %v925 = vld [vmem:[%s3 + $0x84] sm:$0xf]
      %v926 = vld [vmem:[%s3 + $0x88] sm:$0xf]
      %v927 = vld [vmem:[%s3 + $0x8c] sm:$0xf]
      %v928 = vld [vmem:[%s3 + $0x90] sm:$0xf]
      %v929 = vld [vmem:[%s3 + $0x94] sm:$0xf]
      %v930 = vld [vmem:[%s3 + $0x98] sm:$0xf]
      %v931 = vld [vmem:[%s3 + $0x9c] sm:$0xf]
      %v932 = vld [vmem:[%s3 + $0xa0] sm:$0xf]
      %v933 = vld [vmem:[%s3 + $0xa4] sm:$0xf]
      %v934 = vld [vmem:[%s3 + $0xa8] sm:$0xf]
      %v935 = vld [vmem:[%s3 + $0xac] sm:$0xf]
      %v936 = vld [vmem:[%s3 + $0xb0] sm:$0xf]
      %v937 = vld [vmem:[%s3 + $0xb4] sm:$0xf]
      %v938 = vld [vmem:[%s3 + $0xb8] sm:$0xf]
      %v939 = vld [vmem:[%s3 + $0xbc] sm:$0xf]
      %s940 = scalar_lea.vmem [#allocation2], 12
      %v941 = vld [vmem:[%s940] sm:$0xf]
      %v942 = vld [vmem:[%s940 + $0x4] sm:$0xf]
      %v943 = vld [vmem:[%s940 + $0xc] sm:$0xf]
      %v944 = vld [vmem:[%s940 + $0x10] sm:$0xf]
      %v945 = vld [vmem:[%s940 + $0x18] sm:$0xf]
      %v946 = vld [vmem:[%s940 + $0x1c] sm:$0xf]
      %v947 = vld [vmem:[%s940 + $0x24] sm:$0xf]
      %v948 = vld [vmem:[%s940 + $0x28] sm:$0xf]
      %v949 = vld [vmem:[%s940 + $0x8] sm:$0x1]
      %v950 = vld [vmem:[%s940 + $0x14] sm:$0x1]
      %v951 = vld [vmem:[%s940 + $0x20] sm:$0x1]
      %v952 = vld [vmem:[%s940 + $0x2c] sm:$0x1]
      %v953 = vld [vmem:[%s940] sm:$0xe]
      %v954 = vld [vmem:[%s940 + $0xc] sm:$0xe]
      %v955 = vld [vmem:[%s940 + $0x18] sm:$0xe]
      %v956 = vld [vmem:[%s940 + $0x24] sm:$0xe]
      %v965 = vunpack.c.l.b16 %v941
      %v966 = vunpack.c.l.b16 %v942
      %v967 = vunpack.c.l.b16 %v943
      %v968 = vunpack.c.l.b16 %v944
      %v969 = vunpack.c.l.b16 %v945
      %v970 = vunpack.c.l.b16 %v946
      %v971 = vunpack.c.l.b16 %v947
      %v972 = vunpack.c.l.b16 %v948
      %v973 = vpack.c.b16 %v966, %v965
      %v974 = vpack.c.b16 %v968, %v967
      %v975 = vpack.c.b16 %v970, %v969
      %v976 = vpack.c.b16 %v972, %v971
      %v985 = vunpack.c.l.b16 %v949
      %v986 = vunpack.c.l.b16 %v950
      %v987 = vunpack.c.l.b16 %v951
      %v988 = vunpack.c.l.b16 %v952
      %v989 = vpack.c.b16 %v985, %v985
      %v990 = vpack.c.b16 %v986, %v986
      %v991 = vpack.c.b16 %v987, %v987
      %v992 = vpack.c.b16 %v988, %v988
      %v994 = vshrl.u32 %v973, 16
      %v996 = vshll.u32 %v973, 16
      %v998 = vrot.slane %v996, 1
      %v999 = vor.u32 %v994, %v998
      %v1001 = vshll.u32 %v989, 16
      %v1003 = vrot.slane %v1001, 1
      %v1004 = vsel %vm810, %v999, %v1003
      %v1006 = vshrl.u32 %v974, 16
      %v1008 = vshll.u32 %v974, 16
      %v1010 = vrot.slane %v1008, 1
      %v1011 = vor.u32 %v1006, %v1010
      %v1013 = vshll.u32 %v990, 16
      %v1015 = vrot.slane %v1013, 1
      %v1016 = vsel %vm810, %v1011, %v1015
      %v1018 = vshrl.u32 %v975, 16
      %v1020 = vshll.u32 %v975, 16
      %v1022 = vrot.slane %v1020, 1
      %v1023 = vor.u32 %v1018, %v1022
      %v1025 = vshll.u32 %v991, 16
      %v1027 = vrot.slane %v1025, 1
      %v1028 = vsel %vm810, %v1023, %v1027
      %v1030 = vshrl.u32 %v976, 16
      %v1032 = vshll.u32 %v976, 16
      %v1034 = vrot.slane %v1032, 1
      %v1035 = vor.u32 %v1030, %v1034
      %v1037 = vshll.u32 %v992, 16
      %v1039 = vrot.slane %v1037, 1
      %v1040 = vsel %vm810, %v1035, %v1039
      %v1049 = vunpack.c.l.b16 %v953
      %v1050 = vunpack.c.l.b16 %v954
      %v1051 = vunpack.c.l.b16 %v955
      %v1052 = vunpack.c.l.b16 %v956
      %v1053 = vpack.c.b16 %v966, %v1049
      %v1054 = vpack.c.b16 %v968, %v1050
      %v1055 = vpack.c.b16 %v970, %v1051
      %v1056 = vpack.c.b16 %v972, %v1052
      %v1057 = vrot.slane %v1053, 1
      %v1058 = vrot.slane %v989, 1
      %v1059 = vsel %vm875, %v1057, %v1058
      %v1060 = vrot.slane %v1054, 1
      %v1061 = vrot.slane %v990, 1
      %v1062 = vsel %vm875, %v1060, %v1061
      %v1063 = vrot.slane %v1055, 1
      %v1064 = vrot.slane %v991, 1
      %v1065 = vsel %vm875, %v1063, %v1064
      %v1066 = vrot.slane %v1056, 1
      %v1067 = vrot.slane %v992, 1
      %v1068 = vsel %vm875, %v1066, %v1067
      %s1073 = scalar_lea.vmem %s3, 192
      %v1074 = vld [vmem:[%s1073] sm:$0xf]
      %v1075 = vld [vmem:[%s1073 + $0x4] sm:$0xf]
      %v1076 = vld [vmem:[%s1073 + $0x8] sm:$0xf]
      %v1077 = vld [vmem:[%s1073 + $0xc] sm:$0xf]
      %v1078 = vld [vmem:[%s1073 + $0x10] sm:$0xf]
      %v1079 = vld [vmem:[%s1073 + $0x14] sm:$0xf]
      %v1080 = vld [vmem:[%s1073 + $0x18] sm:$0xf]
      %v1081 = vld [vmem:[%s1073 + $0x1c] sm:$0xf]
      %v1082 = vld [vmem:[%s1073 + $0x20] sm:$0xf]
      %v1083 = vld [vmem:[%s1073 + $0x24] sm:$0xf]
      %v1084 = vld [vmem:[%s1073 + $0x28] sm:$0xf]
      %v1085 = vld [vmem:[%s1073 + $0x2c] sm:$0xf]
      %v1086 = vld [vmem:[%s1073 + $0x30] sm:$0xf]
      %v1087 = vld [vmem:[%s1073 + $0x34] sm:$0xf]
      %v1088 = vld [vmem:[%s1073 + $0x38] sm:$0xf]
      %v1089 = vld [vmem:[%s1073 + $0x3c] sm:$0xf]
      %v1090 = vld [vmem:[%s1073 + $0x40] sm:$0xf]
      %v1091 = vld [vmem:[%s1073 + $0x44] sm:$0xf]
      %v1092 = vld [vmem:[%s1073 + $0x48] sm:$0xf]
      %v1093 = vld [vmem:[%s1073 + $0x4c] sm:$0xf]
      %v1094 = vld [vmem:[%s1073 + $0x50] sm:$0xf]
      %v1095 = vld [vmem:[%s1073 + $0x54] sm:$0xf]
      %v1096 = vld [vmem:[%s1073 + $0x58] sm:$0xf]
      %v1097 = vld [vmem:[%s1073 + $0x5c] sm:$0xf]
      %v1098 = vld [vmem:[%s1073 + $0x60] sm:$0xf]
      %v1099 = vld [vmem:[%s1073 + $0x64] sm:$0xf]
      %v1100 = vld [vmem:[%s1073 + $0x68] sm:$0xf]
      %v1101 = vld [vmem:[%s1073 + $0x6c] sm:$0xf]
      %v1102 = vld [vmem:[%s1073 + $0x70] sm:$0xf]
      %v1103 = vld [vmem:[%s1073 + $0x74] sm:$0xf]
      %v1104 = vld [vmem:[%s1073 + $0x78] sm:$0xf]
      %v1105 = vld [vmem:[%s1073 + $0x7c] sm:$0xf]
      %v1106 = vld [vmem:[%s1073 + $0x80] sm:$0xf]
      %v1107 = vld [vmem:[%s1073 + $0x84] sm:$0xf]
      %v1108 = vld [vmem:[%s1073 + $0x88] sm:$0xf]
      %v1109 = vld [vmem:[%s1073 + $0x8c] sm:$0xf]
      %v1110 = vld [vmem:[%s1073 + $0x90] sm:$0xf]
      %v1111 = vld [vmem:[%s1073 + $0x94] sm:$0xf]
      %v1112 = vld [vmem:[%s1073 + $0x98] sm:$0xf]
      %v1113 = vld [vmem:[%s1073 + $0x9c] sm:$0xf]
      %v1114 = vld [vmem:[%s1073 + $0xa0] sm:$0xf]
      %v1115 = vld [vmem:[%s1073 + $0xa4] sm:$0xf]
      %v1116 = vld [vmem:[%s1073 + $0xa8] sm:$0xf]
      %v1117 = vld [vmem:[%s1073 + $0xac] sm:$0xf]
      %v1118 = vld [vmem:[%s1073 + $0xb0] sm:$0xf]
      %v1119 = vld [vmem:[%s1073 + $0xb4] sm:$0xf]
      %v1120 = vld [vmem:[%s1073 + $0xb8] sm:$0xf]
      %v1121 = vld [vmem:[%s1073 + $0xbc] sm:$0xf]
      %v1170 = vunpack.c.l.b16 %v1074
      %v1171 = vunpack.c.l.b16 %v1075
      %v1172 = vunpack.c.l.b16 %v1076
      %v1173 = vunpack.c.l.b16 %v1077
      %v1174 = vunpack.c.l.b16 %v1078
      %v1175 = vunpack.c.l.b16 %v1079
      %v1176 = vunpack.c.l.b16 %v1080
      %v1177 = vunpack.c.l.b16 %v1081
      %v1178 = vunpack.c.l.b16 %v1082
      %v1179 = vunpack.c.l.b16 %v1083
      %v1180 = vunpack.c.l.b16 %v1084
      %v1181 = vunpack.c.l.b16 %v1085
      %v1182 = vunpack.c.l.b16 %v1086
      %v1183 = vunpack.c.l.b16 %v1087
      %v1184 = vunpack.c.l.b16 %v1088
      %v1185 = vunpack.c.l.b16 %v1089
      %v1186 = vunpack.c.l.b16 %v1090
      %v1187 = vunpack.c.l.b16 %v1091
      %v1188 = vunpack.c.l.b16 %v1092
      %v1189 = vunpack.c.l.b16 %v1093
      %v1190 = vunpack.c.l.b16 %v1094
      %v1191 = vunpack.c.l.b16 %v1095
      %v1192 = vunpack.c.l.b16 %v1096
      %v1193 = vunpack.c.l.b16 %v1097
      %v1194 = vunpack.c.l.b16 %v1098
      %v1195 = vunpack.c.l.b16 %v1099
      %v1196 = vunpack.c.l.b16 %v1100
      %v1197 = vunpack.c.l.b16 %v1101
      %v1198 = vunpack.c.l.b16 %v1102
      %v1199 = vunpack.c.l.b16 %v1103
      %v1200 = vunpack.c.l.b16 %v1104
      %v1201 = vunpack.c.l.b16 %v1105
      %v1202 = vunpack.c.l.b16 %v1106
      %v1203 = vunpack.c.l.b16 %v1107
      %v1204 = vunpack.c.l.b16 %v1108
      %v1205 = vunpack.c.l.b16 %v1109
      %v1206 = vunpack.c.l.b16 %v1110
      %v1207 = vunpack.c.l.b16 %v1111
      %v1208 = vunpack.c.l.b16 %v1112
      %v1209 = vunpack.c.l.b16 %v1113
      %v1210 = vunpack.c.l.b16 %v1114
      %v1211 = vunpack.c.l.b16 %v1115
      %v1212 = vunpack.c.l.b16 %v1116
      %v1213 = vunpack.c.l.b16 %v1117
      %v1214 = vunpack.c.l.b16 %v1118
      %v1215 = vunpack.c.l.b16 %v1119
      %v1216 = vunpack.c.l.b16 %v1120
      %v1217 = vunpack.c.l.b16 %v1121
      %v1218 = vpack.c.b16 %v1171, %v1170
      %v1219 = vpack.c.b16 %v1173, %v1172
      %v1220 = vpack.c.b16 %v1175, %v1174
      %v1221 = vpack.c.b16 %v1177, %v1176
      %v1222 = vpack.c.b16 %v1179, %v1178
      %v1223 = vpack.c.b16 %v1181, %v1180
      %v1224 = vpack.c.b16 %v1183, %v1182
      %v1225 = vpack.c.b16 %v1185, %v1184
      %v1226 = vpack.c.b16 %v1187, %v1186
      %v1227 = vpack.c.b16 %v1189, %v1188
      %v1228 = vpack.c.b16 %v1191, %v1190
      %v1229 = vpack.c.b16 %v1193, %v1192
      %v1230 = vpack.c.b16 %v1195, %v1194
      %v1231 = vpack.c.b16 %v1197, %v1196
      %v1232 = vpack.c.b16 %v1199, %v1198
      %v1233 = vpack.c.b16 %v1201, %v1200
      %v1234 = vpack.c.b16 %v1203, %v1202
      %v1235 = vpack.c.b16 %v1205, %v1204
      %v1236 = vpack.c.b16 %v1207, %v1206
      %v1237 = vpack.c.b16 %v1209, %v1208
      %v1238 = vpack.c.b16 %v1211, %v1210
      %v1239 = vpack.c.b16 %v1213, %v1212
      %v1240 = vpack.c.b16 %v1215, %v1214
      %v1241 = vpack.c.b16 %v1217, %v1216
      %1266 = vmatprep.subr.bf16.mxu0 0
      %1267 = vmatpush1.bf16.msra.mxu0 %v1225
      %1268 = vmatprep.subr.bf16.mxu0 0
      %1269 = vmatpush1.bf16.msra.mxu0 %v1224
      %1270 = vmatprep.subr.bf16.mxu0 0
      %1271 = vmatpush1.bf16.msra.mxu0 %v1223
      %1272 = vmatprep.subr.bf16.mxu0 0
      %1273 = vmatpush1.bf16.msra.mxu0 %v1222
      %1274 = vmatprep.subr.bf16.mxu0 0
      %1275 = vmatpush1.bf16.msra.mxu0 %v1221
      %1276 = vmatprep.subr.bf16.mxu0 0
      %1277 = vmatpush1.bf16.msra.mxu0 %v1220
      %1278 = vmatprep.subr.bf16.mxu0 0
      %1279 = vmatpush1.bf16.msra.mxu0 %v1219
      %1280 = vmatprep.subr.bf16.mxu0 0
      %1281 = vmatpush1.bf16.msra.mxu0 %v1218
      %1282 = vmatprep.subr.bf16.mxu0 0
      %1283 = vmatpush2.bf16.msra.mxu0 %v1233
      %1284 = vmatprep.subr.bf16.mxu0 0
      %1285 = vmatpush2.bf16.msra.mxu0 %v1232
      %1286 = vmatprep.subr.bf16.mxu0 0
      %1287 = vmatpush2.bf16.msra.mxu0 %v1231
      %1288 = vmatprep.subr.bf16.mxu0 0
      %1289 = vmatpush2.bf16.msra.mxu0 %v1230
      %1290 = vmatprep.subr.bf16.mxu0 0
      %1291 = vmatpush2.bf16.msra.mxu0 %v1229
      %1292 = vmatprep.subr.bf16.mxu0 0
      %1293 = vmatpush2.bf16.msra.mxu0 %v1228
      %1294 = vmatprep.subr.bf16.mxu0 0
      %1295 = vmatpush2.bf16.msra.mxu0 %v1227
      %1296 = vmatprep.subr.bf16.mxu0 0
      %1297 = vmatpush2.bf16.msra.mxu0 %v1226
      %1298 = vmatprep.mubr.bf16.mxu0 %v1004
      %1299 = vmatmul.mubr.bf16.gmra.mxu0 %v973
      %v1300 = vpop.f32.mrf.mxu0
      %v1301 = vadd.f32 0.0, %v1300
      %v1302 = vpop.f32.mrf.mxu0
      %v1303 = vpop.f32.mrf.mxu0
      %v1304 = vadd.f32 0.0, %v1303
      %v1305 = vpop.f32.mrf.mxu0
      %1306 = vmatprep.mubr.bf16.mxu0 %v1016
      %1307 = vmatmul.mubr.bf16.gmra.mxu0 %v974
      %v1308 = vpop.f32.mrf.mxu0
      %v1309 = vadd.f32 0.0, %v1308
      %v1310 = vpop.f32.mrf.mxu0
      %v1311 = vpop.f32.mrf.mxu0
      %v1312 = vadd.f32 0.0, %v1311
      %v1313 = vpop.f32.mrf.mxu0
      %1314 = vmatprep.mubr.bf16.mxu0 %v1028
      %1315 = vmatmul.mubr.bf16.gmra.mxu0 %v975
      %v1316 = vpop.f32.mrf.mxu0
      %v1317 = vadd.f32 0.0, %v1316
      %v1318 = vpop.f32.mrf.mxu0
      %v1319 = vpop.f32.mrf.mxu0
      %v1320 = vadd.f32 0.0, %v1319
      %v1321 = vpop.f32.mrf.mxu0
      %1322 = vmatprep.mubr.bf16.mxu0 %v1040
      %1323 = vmatmul.mubr.bf16.gmra.mxu0 %v976
      %v1324 = vpop.f32.mrf.mxu0
      %v1325 = vadd.f32 0.0, %v1324
      %v1326 = vpop.f32.mrf.mxu0
      %v1327 = vpop.f32.mrf.mxu0
      %v1328 = vadd.f32 0.0, %v1327
      %v1329 = vpop.f32.mrf.mxu0
      %1330 = vdwg.mxu0
      %1331 = vmatprep.subr.bf16.mxu0 0
      %1332 = vmatpush1.bf16.msra.mxu0 %v1241
      %1333 = vmatprep.subr.bf16.mxu0 0
      %1334 = vmatpush1.bf16.msra.mxu0 %v1240
      %1335 = vmatprep.subr.bf16.mxu0 0
      %1336 = vmatpush1.bf16.msra.mxu0 %v1239
      %1337 = vmatprep.subr.bf16.mxu0 0
      %1338 = vmatpush1.bf16.msra.mxu0 %v1238
      %1339 = vmatprep.subr.bf16.mxu0 0
      %1340 = vmatpush1.bf16.msra.mxu0 %v1237
      %1341 = vmatprep.subr.bf16.mxu0 0
      %1342 = vmatpush1.bf16.msra.mxu0 %v1236
      %1343 = vmatprep.subr.bf16.mxu0 0
      %1344 = vmatpush1.bf16.msra.mxu0 %v1235
      %1345 = vmatprep.subr.bf16.mxu0 0
      %1346 = vmatpush1.bf16.msra.mxu0 %v1234
      %1347 = vmatprep.subr.bf16.mxu0 0
      %1348 = vmatpush2.bf16.msra.mxu0 0
      %1349 = vmatprep.subr.bf16.mxu0 0
      %1350 = vmatpush2.bf16.msra.mxu0 0
      %1351 = vmatprep.subr.bf16.mxu0 0
      %1352 = vmatpush2.bf16.msra.mxu0 0
      %1353 = vmatprep.subr.bf16.mxu0 0
      %1354 = vmatpush2.bf16.msra.mxu0 0
      %1355 = vmatprep.subr.bf16.mxu0 0
      %1356 = vmatpush2.bf16.msra.mxu0 0
      %1357 = vmatprep.subr.bf16.mxu0 0
      %1358 = vmatpush2.bf16.msra.mxu0 0
      %1359 = vmatprep.subr.bf16.mxu0 0
      %1360 = vmatpush2.bf16.msra.mxu0 0
      %1361 = vmatprep.subr.bf16.mxu0 0
      %1362 = vmatpush2.bf16.msra.mxu0 0
      %1363 = vmatprep.mubr.bf16.mxu0 0
      %1364 = vmatmul.mubr.bf16.gmra.mxu0 %v1059
      %v1365 = vpop.f32.mrf.mxu0
      %v1366 = vadd.f32 %v1301, %v1365
      %v1367 = vpop.f32.mrf.mxu0
      %v1368 = vpop.f32.mrf.mxu0
      %v1369 = vadd.f32 %v1304, %v1368
      %v1370 = vpop.f32.mrf.mxu0
      %1371 = vmatprep.mubr.bf16.mxu0 0
      %1372 = vmatmul.mubr.bf16.gmra.mxu0 %v1062
      %v1373 = vpop.f32.mrf.mxu0
      %v1374 = vadd.f32 %v1309, %v1373
      %v1375 = vpop.f32.mrf.mxu0
      %v1376 = vpop.f32.mrf.mxu0
      %v1377 = vadd.f32 %v1312, %v1376
      %v1378 = vpop.f32.mrf.mxu0
      %1379 = vmatprep.mubr.bf16.mxu0 0
      %1380 = vmatmul.mubr.bf16.gmra.mxu0 %v1065
      %v1381 = vpop.f32.mrf.mxu0
      %v1382 = vadd.f32 %v1317, %v1381
      %v1383 = vpop.f32.mrf.mxu0
      %v1384 = vpop.f32.mrf.mxu0
      %v1385 = vadd.f32 %v1320, %v1384
      %v1386 = vpop.f32.mrf.mxu0
      %1387 = vmatprep.mubr.bf16.mxu0 0
      %1388 = vmatmul.mubr.bf16.gmra.mxu0 %v1068
      %v1389 = vpop.f32.mrf.mxu0
      %v1390 = vadd.f32 %v1325, %v1389
      %v1391 = vpop.f32.mrf.mxu0
      %v1392 = vpop.f32.mrf.mxu0
      %v1393 = vadd.f32 %v1328, %v1392
      %v1394 = vpop.f32.mrf.mxu0
      %1395 = vdwg.mxu0
      %v1444 = vunpack.c.l.b16 %v892
      %v1445 = vunpack.c.l.b16 %v893
      %v1446 = vunpack.c.l.b16 %v894
      %v1447 = vunpack.c.l.b16 %v895
      %v1448 = vunpack.c.l.b16 %v896
      %v1449 = vunpack.c.l.b16 %v897
      %v1450 = vunpack.c.l.b16 %v898
      %v1451 = vunpack.c.l.b16 %v899
      %v1452 = vunpack.c.l.b16 %v900
      %v1453 = vunpack.c.l.b16 %v901
      %v1454 = vunpack.c.l.b16 %v902
      %v1455 = vunpack.c.l.b16 %v903
      %v1456 = vunpack.c.l.b16 %v904
      %v1457 = vunpack.c.l.b16 %v905
      %v1458 = vunpack.c.l.b16 %v906
      %v1459 = vunpack.c.l.b16 %v907
      %v1460 = vunpack.c.l.b16 %v908
      %v1461 = vunpack.c.l.b16 %v909
      %v1462 = vunpack.c.l.b16 %v910
      %v1463 = vunpack.c.l.b16 %v911
      %v1464 = vunpack.c.l.b16 %v912
      %v1465 = vunpack.c.l.b16 %v913
      %v1466 = vunpack.c.l.b16 %v914
      %v1467 = vunpack.c.l.b16 %v915
      %v1468 = vunpack.c.l.b16 %v916
      %v1469 = vunpack.c.l.b16 %v917
      %v1470 = vunpack.c.l.b16 %v918
      %v1471 = vunpack.c.l.b16 %v919
      %v1472 = vunpack.c.l.b16 %v920
      %v1473 = vunpack.c.l.b16 %v921
      %v1474 = vunpack.c.l.b16 %v922
      %v1475 = vunpack.c.l.b16 %v923
      %v1476 = vunpack.c.l.b16 %v924
      %v1477 = vunpack.c.l.b16 %v925
      %v1478 = vunpack.c.l.b16 %v926
      %v1479 = vunpack.c.l.b16 %v927
      %v1480 = vunpack.c.l.b16 %v928
      %v1481 = vunpack.c.l.b16 %v929
      %v1482 = vunpack.c.l.b16 %v930
      %v1483 = vunpack.c.l.b16 %v931
      %v1484 = vunpack.c.l.b16 %v932
      %v1485 = vunpack.c.l.b16 %v933
      %v1486 = vunpack.c.l.b16 %v934
      %v1487 = vunpack.c.l.b16 %v935
      %v1488 = vunpack.c.l.b16 %v936
      %v1489 = vunpack.c.l.b16 %v937
      %v1490 = vunpack.c.l.b16 %v938
      %v1491 = vunpack.c.l.b16 %v939
      %v1492 = vpack.c.b16 %v1445, %v1444
      %v1493 = vpack.c.b16 %v1447, %v1446
      %v1494 = vpack.c.b16 %v1449, %v1448
      %v1495 = vpack.c.b16 %v1451, %v1450
      %v1496 = vpack.c.b16 %v1453, %v1452
      %v1497 = vpack.c.b16 %v1455, %v1454
      %v1498 = vpack.c.b16 %v1457, %v1456
      %v1499 = vpack.c.b16 %v1459, %v1458
      %v1500 = vpack.c.b16 %v1461, %v1460
      %v1501 = vpack.c.b16 %v1463, %v1462
      %v1502 = vpack.c.b16 %v1465, %v1464
      %v1503 = vpack.c.b16 %v1467, %v1466
      %v1504 = vpack.c.b16 %v1469, %v1468
      %v1505 = vpack.c.b16 %v1471, %v1470
      %v1506 = vpack.c.b16 %v1473, %v1472
      %v1507 = vpack.c.b16 %v1475, %v1474
      %v1508 = vpack.c.b16 %v1477, %v1476
      %v1509 = vpack.c.b16 %v1479, %v1478
      %v1510 = vpack.c.b16 %v1481, %v1480
      %v1511 = vpack.c.b16 %v1483, %v1482
      %v1512 = vpack.c.b16 %v1485, %v1484
      %v1513 = vpack.c.b16 %v1487, %v1486
      %v1514 = vpack.c.b16 %v1489, %v1488
      %v1515 = vpack.c.b16 %v1491, %v1490
      %1540 = vmatprep.subr.bf16.mxu0 0
      %1541 = vmatpush1.bf16.msra.mxu0 %v1499
      %1542 = vmatprep.subr.bf16.mxu0 0
      %1543 = vmatpush1.bf16.msra.mxu0 %v1498
      %1544 = vmatprep.subr.bf16.mxu0 0
      %1545 = vmatpush1.bf16.msra.mxu0 %v1497
      %1546 = vmatprep.subr.bf16.mxu0 0
      %1547 = vmatpush1.bf16.msra.mxu0 %v1496
      %1548 = vmatprep.subr.bf16.mxu0 0
      %1549 = vmatpush1.bf16.msra.mxu0 %v1495
      %1550 = vmatprep.subr.bf16.mxu0 0
      %1551 = vmatpush1.bf16.msra.mxu0 %v1494
      %1552 = vmatprep.subr.bf16.mxu0 0
      %1553 = vmatpush1.bf16.msra.mxu0 %v1493
      %1554 = vmatprep.subr.bf16.mxu0 0
      %1555 = vmatpush1.bf16.msra.mxu0 %v1492
      %1556 = vmatprep.subr.bf16.mxu0 0
      %1557 = vmatpush2.bf16.msra.mxu0 %v1507
      %1558 = vmatprep.subr.bf16.mxu0 0
      %1559 = vmatpush2.bf16.msra.mxu0 %v1506
      %1560 = vmatprep.subr.bf16.mxu0 0
      %1561 = vmatpush2.bf16.msra.mxu0 %v1505
      %1562 = vmatprep.subr.bf16.mxu0 0
      %1563 = vmatpush2.bf16.msra.mxu0 %v1504
      %1564 = vmatprep.subr.bf16.mxu0 0
      %1565 = vmatpush2.bf16.msra.mxu0 %v1503
      %1566 = vmatprep.subr.bf16.mxu0 0
      %1567 = vmatpush2.bf16.msra.mxu0 %v1502
      %1568 = vmatprep.subr.bf16.mxu0 0
      %1569 = vmatpush2.bf16.msra.mxu0 %v1501
      %1570 = vmatprep.subr.bf16.mxu0 0
      %1571 = vmatpush2.bf16.msra.mxu0 %v1500
      %1572 = vmatprep.mubr.bf16.mxu0 %v822
      %1573 = vmatmul.mubr.bf16.gmra.mxu0 %v790
      %v1574 = vpop.f32.mrf.mxu0
      %v1575 = vadd.f32 %v1366, %v1574
      %v1576 = vpop.f32.mrf.mxu0
      %v1577 = vpop.f32.mrf.mxu0
      %v1578 = vadd.f32 %v1369, %v1577
      %v1579 = vpop.f32.mrf.mxu0
      %1580 = vmatprep.mubr.bf16.mxu0 %v834
      %1581 = vmatmul.mubr.bf16.gmra.mxu0 %v791
      %v1582 = vpop.f32.mrf.mxu0
      %v1583 = vadd.f32 %v1374, %v1582
      %v1584 = vpop.f32.mrf.mxu0
      %v1585 = vpop.f32.mrf.mxu0
      %v1586 = vadd.f32 %v1377, %v1585
      %v1587 = vpop.f32.mrf.mxu0
      %1588 = vmatprep.mubr.bf16.mxu0 %v846
      %1589 = vmatmul.mubr.bf16.gmra.mxu0 %v792
      %v1590 = vpop.f32.mrf.mxu0
      %v1591 = vadd.f32 %v1382, %v1590
      %v1592 = vpop.f32.mrf.mxu0
      %v1593 = vpop.f32.mrf.mxu0
      %v1594 = vadd.f32 %v1385, %v1593
      %v1595 = vpop.f32.mrf.mxu0
      %1596 = vmatprep.mubr.bf16.mxu0 %v858
      %1597 = vmatmul.mubr.bf16.gmra.mxu0 %v793
      %v1598 = vpop.f32.mrf.mxu0
      %v1599 = vadd.f32 %v1390, %v1598
      %v1600 = vpop.f32.mrf.mxu0
      %v1601 = vpop.f32.mrf.mxu0
      %v1602 = vadd.f32 %v1393, %v1601
      %v1603 = vpop.f32.mrf.mxu0
      %1604 = vdwg.mxu0
      %1605 = vmatprep.subr.bf16.mxu0 0
      %1606 = vmatpush1.bf16.msra.mxu0 %v1515
      %1607 = vmatprep.subr.bf16.mxu0 0
      %1608 = vmatpush1.bf16.msra.mxu0 %v1514
      %1609 = vmatprep.subr.bf16.mxu0 0
      %1610 = vmatpush1.bf16.msra.mxu0 %v1513
      %1611 = vmatprep.subr.bf16.mxu0 0
      %1612 = vmatpush1.bf16.msra.mxu0 %v1512
      %1613 = vmatprep.subr.bf16.mxu0 0
      %1614 = vmatpush1.bf16.msra.mxu0 %v1511
      %1615 = vmatprep.subr.bf16.mxu0 0
      %1616 = vmatpush1.bf16.msra.mxu0 %v1510
      %1617 = vmatprep.subr.bf16.mxu0 0
      %1618 = vmatpush1.bf16.msra.mxu0 %v1509
      %1619 = vmatprep.subr.bf16.mxu0 0
      %1620 = vmatpush1.bf16.msra.mxu0 %v1508
      %1621 = vmatprep.subr.bf16.mxu0 0
      %1622 = vmatpush2.bf16.msra.mxu0 0
      %1623 = vmatprep.subr.bf16.mxu0 0
      %1624 = vmatpush2.bf16.msra.mxu0 0
      %1625 = vmatprep.subr.bf16.mxu0 0
      %1626 = vmatpush2.bf16.msra.mxu0 0
      %1627 = vmatprep.subr.bf16.mxu0 0
      %1628 = vmatpush2.bf16.msra.mxu0 0
      %1629 = vmatprep.subr.bf16.mxu0 0
      %1630 = vmatpush2.bf16.msra.mxu0 0
      %1631 = vmatprep.subr.bf16.mxu0 0
      %1632 = vmatpush2.bf16.msra.mxu0 0
      %1633 = vmatprep.subr.bf16.mxu0 0
      %1634 = vmatpush2.bf16.msra.mxu0 0
      %1635 = vmatprep.subr.bf16.mxu0 0
      %1636 = vmatpush2.bf16.msra.mxu0 0
      %1637 = vmatprep.mubr.bf16.mxu0 0
      %1638 = vmatmul.mubr.bf16.gmra.mxu0 %v878
      %v1639 = vpop.f32.mrf.mxu0
      %v1640 = vadd.f32 %v1575, %v1639
      %v1641 = vpop.f32.mrf.mxu0
      %v1642 = vpop.f32.mrf.mxu0
      %v1643 = vadd.f32 %v1578, %v1642
      %v1644 = vpop.f32.mrf.mxu0
      %1645 = vmatprep.mubr.bf16.mxu0 0
      %1646 = vmatmul.mubr.bf16.gmra.mxu0 %v881
      %v1647 = vpop.f32.mrf.mxu0
      %v1648 = vadd.f32 %v1583, %v1647
      %v1649 = vpop.f32.mrf.mxu0
      %v1650 = vpop.f32.mrf.mxu0
      %v1651 = vadd.f32 %v1586, %v1650
      %v1652 = vpop.f32.mrf.mxu0
      %1653 = vmatprep.mubr.bf16.mxu0 0
      %1654 = vmatmul.mubr.bf16.gmra.mxu0 %v884
      %v1655 = vpop.f32.mrf.mxu0
      %v1656 = vadd.f32 %v1591, %v1655
      %v1657 = vpop.f32.mrf.mxu0
      %v1658 = vpop.f32.mrf.mxu0
      %v1659 = vadd.f32 %v1594, %v1658
      %v1660 = vpop.f32.mrf.mxu0
      %1661 = vmatprep.mubr.bf16.mxu0 0
      %1662 = vmatmul.mubr.bf16.gmra.mxu0 %v887
      %v1663 = vpop.f32.mrf.mxu0
      %v1664 = vadd.f32 %v1599, %v1663
      %v1665 = vpop.f32.mrf.mxu0
      %v1666 = vpop.f32.mrf.mxu0
      %v1667 = vadd.f32 %v1602, %v1666
      %v1668 = vpop.f32.mrf.mxu0
      %1669 = vdwg.mxu0
      %s1670 = scalar_lea.vmem [#allocation2], 24
      %v1671 = vld [vmem:[%s1670] sm:$0xf]
      %v1672 = vld [vmem:[%s1670 + $0x4] sm:$0xf]
      %v1673 = vld [vmem:[%s1670 + $0xc] sm:$0xf]
      %v1674 = vld [vmem:[%s1670 + $0x10] sm:$0xf]
      %v1675 = vld [vmem:[%s1670 + $0x18] sm:$0xf]
      %v1676 = vld [vmem:[%s1670 + $0x1c] sm:$0xf]
      %v1677 = vld [vmem:[%s1670 + $0x24] sm:$0xf]
      %v1678 = vld [vmem:[%s1670 + $0x28] sm:$0xf]
      %v1679 = vld [vmem:[%s1670 + $0x8] sm:$0x1]
      %v1680 = vld [vmem:[%s1670 + $0x14] sm:$0x1]
      %v1681 = vld [vmem:[%s1670 + $0x20] sm:$0x1]
      %v1682 = vld [vmem:[%s1670 + $0x2c] sm:$0x1]
      %v1683 = vld [vmem:[%s1670] sm:$0xe]
      %v1684 = vld [vmem:[%s1670 + $0xc] sm:$0xe]
      %v1685 = vld [vmem:[%s1670 + $0x18] sm:$0xe]
      %v1686 = vld [vmem:[%s1670 + $0x24] sm:$0xe]
      %v1695 = vunpack.c.l.b16 %v1671
      %v1696 = vunpack.c.l.b16 %v1672
      %v1697 = vunpack.c.l.b16 %v1673
      %v1698 = vunpack.c.l.b16 %v1674
      %v1699 = vunpack.c.l.b16 %v1675
      %v1700 = vunpack.c.l.b16 %v1676
      %v1701 = vunpack.c.l.b16 %v1677
      %v1702 = vunpack.c.l.b16 %v1678
      %v1703 = vpack.c.b16 %v1696, %v1695
      %v1704 = vpack.c.b16 %v1698, %v1697
      %v1705 = vpack.c.b16 %v1700, %v1699
      %v1706 = vpack.c.b16 %v1702, %v1701
      %v1715 = vunpack.c.l.b16 %v1679
      %v1716 = vunpack.c.l.b16 %v1680
      %v1717 = vunpack.c.l.b16 %v1681
      %v1718 = vunpack.c.l.b16 %v1682
      %v1719 = vpack.c.b16 %v1715, %v1715
      %v1720 = vpack.c.b16 %v1716, %v1716
      %v1721 = vpack.c.b16 %v1717, %v1717
      %v1722 = vpack.c.b16 %v1718, %v1718
      %v1724 = vshrl.u32 %v1703, 16
      %v1726 = vshll.u32 %v1703, 16
      %v1728 = vrot.slane %v1726, 1
      %v1729 = vor.u32 %v1724, %v1728
      %v1731 = vshll.u32 %v1719, 16
      %v1733 = vrot.slane %v1731, 1
      %v1734 = vsel %vm810, %v1729, %v1733
      %v1736 = vshrl.u32 %v1704, 16
      %v1738 = vshll.u32 %v1704, 16
      %v1740 = vrot.slane %v1738, 1
      %v1741 = vor.u32 %v1736, %v1740
      %v1743 = vshll.u32 %v1720, 16
      %v1745 = vrot.slane %v1743, 1
      %v1746 = vsel %vm810, %v1741, %v1745
      %v1748 = vshrl.u32 %v1705, 16
      %v1750 = vshll.u32 %v1705, 16
      %v1752 = vrot.slane %v1750, 1
      %v1753 = vor.u32 %v1748, %v1752
      %v1755 = vshll.u32 %v1721, 16
      %v1757 = vrot.slane %v1755, 1
      %v1758 = vsel %vm810, %v1753, %v1757
      %v1760 = vshrl.u32 %v1706, 16
      %v1762 = vshll.u32 %v1706, 16
      %v1764 = vrot.slane %v1762, 1
      %v1765 = vor.u32 %v1760, %v1764
      %v1767 = vshll.u32 %v1722, 16
      %v1769 = vrot.slane %v1767, 1
      %v1770 = vsel %vm810, %v1765, %v1769
      %v1779 = vunpack.c.l.b16 %v1683
      %v1780 = vunpack.c.l.b16 %v1684
      %v1781 = vunpack.c.l.b16 %v1685
      %v1782 = vunpack.c.l.b16 %v1686
      %v1783 = vpack.c.b16 %v1696, %v1779
      %v1784 = vpack.c.b16 %v1698, %v1780
      %v1785 = vpack.c.b16 %v1700, %v1781
      %v1786 = vpack.c.b16 %v1702, %v1782
      %v1787 = vrot.slane %v1783, 1
      %v1788 = vrot.slane %v1719, 1
      %v1789 = vsel %vm875, %v1787, %v1788
      %v1790 = vrot.slane %v1784, 1
      %v1791 = vrot.slane %v1720, 1
      %v1792 = vsel %vm875, %v1790, %v1791
      %v1793 = vrot.slane %v1785, 1
      %v1794 = vrot.slane %v1721, 1
      %v1795 = vsel %vm875, %v1793, %v1794
      %v1796 = vrot.slane %v1786, 1
      %v1797 = vrot.slane %v1722, 1
      %v1798 = vsel %vm875, %v1796, %v1797
      %s1803 = scalar_lea.vmem %s3, 384
      %v1804 = vld [vmem:[%s1803] sm:$0xf]
      %v1805 = vld [vmem:[%s1803 + $0x4] sm:$0xf]
      %v1806 = vld [vmem:[%s1803 + $0x8] sm:$0xf]
      %v1807 = vld [vmem:[%s1803 + $0xc] sm:$0xf]
      %v1808 = vld [vmem:[%s1803 + $0x10] sm:$0xf]
      %v1809 = vld [vmem:[%s1803 + $0x14] sm:$0xf]
      %v1810 = vld [vmem:[%s1803 + $0x18] sm:$0xf]
      %v1811 = vld [vmem:[%s1803 + $0x1c] sm:$0xf]
      %v1812 = vld [vmem:[%s1803 + $0x20] sm:$0xf]
      %v1813 = vld [vmem:[%s1803 + $0x24] sm:$0xf]
      %v1814 = vld [vmem:[%s1803 + $0x28] sm:$0xf]
      %v1815 = vld [vmem:[%s1803 + $0x2c] sm:$0xf]
      %v1816 = vld [vmem:[%s1803 + $0x30] sm:$0xf]
      %v1817 = vld [vmem:[%s1803 + $0x34] sm:$0xf]
      %v1818 = vld [vmem:[%s1803 + $0x38] sm:$0xf]
      %v1819 = vld [vmem:[%s1803 + $0x3c] sm:$0xf]
      %v1820 = vld [vmem:[%s1803 + $0x40] sm:$0xf]
      %v1821 = vld [vmem:[%s1803 + $0x44] sm:$0xf]
      %v1822 = vld [vmem:[%s1803 + $0x48] sm:$0xf]
      %v1823 = vld [vmem:[%s1803 + $0x4c] sm:$0xf]
      %v1824 = vld [vmem:[%s1803 + $0x50] sm:$0xf]
      %v1825 = vld [vmem:[%s1803 + $0x54] sm:$0xf]
      %v1826 = vld [vmem:[%s1803 + $0x58] sm:$0xf]
      %v1827 = vld [vmem:[%s1803 + $0x5c] sm:$0xf]
      %v1828 = vld [vmem:[%s1803 + $0x60] sm:$0xf]
      %v1829 = vld [vmem:[%s1803 + $0x64] sm:$0xf]
      %v1830 = vld [vmem:[%s1803 + $0x68] sm:$0xf]
      %v1831 = vld [vmem:[%s1803 + $0x6c] sm:$0xf]
      %v1832 = vld [vmem:[%s1803 + $0x70] sm:$0xf]
      %v1833 = vld [vmem:[%s1803 + $0x74] sm:$0xf]
      %v1834 = vld [vmem:[%s1803 + $0x78] sm:$0xf]
      %v1835 = vld [vmem:[%s1803 + $0x7c] sm:$0xf]
      %v1836 = vld [vmem:[%s1803 + $0x80] sm:$0xf]
      %v1837 = vld [vmem:[%s1803 + $0x84] sm:$0xf]
      %v1838 = vld [vmem:[%s1803 + $0x88] sm:$0xf]
      %v1839 = vld [vmem:[%s1803 + $0x8c] sm:$0xf]
      %v1840 = vld [vmem:[%s1803 + $0x90] sm:$0xf]
      %v1841 = vld [vmem:[%s1803 + $0x94] sm:$0xf]
      %v1842 = vld [vmem:[%s1803 + $0x98] sm:$0xf]
      %v1843 = vld [vmem:[%s1803 + $0x9c] sm:$0xf]
      %v1844 = vld [vmem:[%s1803 + $0xa0] sm:$0xf]
      %v1845 = vld [vmem:[%s1803 + $0xa4] sm:$0xf]
      %v1846 = vld [vmem:[%s1803 + $0xa8] sm:$0xf]
      %v1847 = vld [vmem:[%s1803 + $0xac] sm:$0xf]
      %v1848 = vld [vmem:[%s1803 + $0xb0] sm:$0xf]
      %v1849 = vld [vmem:[%s1803 + $0xb4] sm:$0xf]
      %v1850 = vld [vmem:[%s1803 + $0xb8] sm:$0xf]
      %v1851 = vld [vmem:[%s1803 + $0xbc] sm:$0xf]
      %v1900 = vunpack.c.l.b16 %v1804
      %v1901 = vunpack.c.l.b16 %v1805
      %v1902 = vunpack.c.l.b16 %v1806
      %v1903 = vunpack.c.l.b16 %v1807
      %v1904 = vunpack.c.l.b16 %v1808
      %v1905 = vunpack.c.l.b16 %v1809
      %v1906 = vunpack.c.l.b16 %v1810
      %v1907 = vunpack.c.l.b16 %v1811
      %v1908 = vunpack.c.l.b16 %v1812
      %v1909 = vunpack.c.l.b16 %v1813
      %v1910 = vunpack.c.l.b16 %v1814
      %v1911 = vunpack.c.l.b16 %v1815
      %v1912 = vunpack.c.l.b16 %v1816
      %v1913 = vunpack.c.l.b16 %v1817
      %v1914 = vunpack.c.l.b16 %v1818
      %v1915 = vunpack.c.l.b16 %v1819
      %v1916 = vunpack.c.l.b16 %v1820
      %v1917 = vunpack.c.l.b16 %v1821
      %v1918 = vunpack.c.l.b16 %v1822
      %v1919 = vunpack.c.l.b16 %v1823
      %v1920 = vunpack.c.l.b16 %v1824
      %v1921 = vunpack.c.l.b16 %v1825
      %v1922 = vunpack.c.l.b16 %v1826
      %v1923 = vunpack.c.l.b16 %v1827
      %v1924 = vunpack.c.l.b16 %v1828
      %v1925 = vunpack.c.l.b16 %v1829
      %v1926 = vunpack.c.l.b16 %v1830
      %v1927 = vunpack.c.l.b16 %v1831
      %v1928 = vunpack.c.l.b16 %v1832
      %v1929 = vunpack.c.l.b16 %v1833
      %v1930 = vunpack.c.l.b16 %v1834
      %v1931 = vunpack.c.l.b16 %v1835
      %v1932 = vunpack.c.l.b16 %v1836
      %v1933 = vunpack.c.l.b16 %v1837
      %v1934 = vunpack.c.l.b16 %v1838
      %v1935 = vunpack.c.l.b16 %v1839
      %v1936 = vunpack.c.l.b16 %v1840
      %v1937 = vunpack.c.l.b16 %v1841
      %v1938 = vunpack.c.l.b16 %v1842
      %v1939 = vunpack.c.l.b16 %v1843
      %v1940 = vunpack.c.l.b16 %v1844
      %v1941 = vunpack.c.l.b16 %v1845
      %v1942 = vunpack.c.l.b16 %v1846
      %v1943 = vunpack.c.l.b16 %v1847
      %v1944 = vunpack.c.l.b16 %v1848
      %v1945 = vunpack.c.l.b16 %v1849
      %v1946 = vunpack.c.l.b16 %v1850
      %v1947 = vunpack.c.l.b16 %v1851
      %v1948 = vpack.c.b16 %v1901, %v1900
      %v1949 = vpack.c.b16 %v1903, %v1902
      %v1950 = vpack.c.b16 %v1905, %v1904
      %v1951 = vpack.c.b16 %v1907, %v1906
      %v1952 = vpack.c.b16 %v1909, %v1908
      %v1953 = vpack.c.b16 %v1911, %v1910
      %v1954 = vpack.c.b16 %v1913, %v1912
      %v1955 = vpack.c.b16 %v1915, %v1914
      %v1956 = vpack.c.b16 %v1917, %v1916
      %v1957 = vpack.c.b16 %v1919, %v1918
      %v1958 = vpack.c.b16 %v1921, %v1920
      %v1959 = vpack.c.b16 %v1923, %v1922
      %v1960 = vpack.c.b16 %v1925, %v1924
      %v1961 = vpack.c.b16 %v1927, %v1926
      %v1962 = vpack.c.b16 %v1929, %v1928
      %v1963 = vpack.c.b16 %v1931, %v1930
      %v1964 = vpack.c.b16 %v1933, %v1932
      %v1965 = vpack.c.b16 %v1935, %v1934
      %v1966 = vpack.c.b16 %v1937, %v1936
      %v1967 = vpack.c.b16 %v1939, %v1938
      %v1968 = vpack.c.b16 %v1941, %v1940
      %v1969 = vpack.c.b16 %v1943, %v1942
      %v1970 = vpack.c.b16 %v1945, %v1944
      %v1971 = vpack.c.b16 %v1947, %v1946
      %1996 = vmatprep.subr.bf16.mxu0 0
      %1997 = vmatpush1.bf16.msra.mxu0 %v1955
      %1998 = vmatprep.subr.bf16.mxu0 0
      %1999 = vmatpush1.bf16.msra.mxu0 %v1954
      %2000 = vmatprep.subr.bf16.mxu0 0
      %2001 = vmatpush1.bf16.msra.mxu0 %v1953
      %2002 = vmatprep.subr.bf16.mxu0 0
      %2003 = vmatpush1.bf16.msra.mxu0 %v1952
      %2004 = vmatprep.subr.bf16.mxu0 0
      %2005 = vmatpush1.bf16.msra.mxu0 %v1951
      %2006 = vmatprep.subr.bf16.mxu0 0
      %2007 = vmatpush1.bf16.msra.mxu0 %v1950
      %2008 = vmatprep.subr.bf16.mxu0 0
      %2009 = vmatpush1.bf16.msra.mxu0 %v1949
      %2010 = vmatprep.subr.bf16.mxu0 0
      %2011 = vmatpush1.bf16.msra.mxu0 %v1948
      %2012 = vmatprep.subr.bf16.mxu0 0
      %2013 = vmatpush2.bf16.msra.mxu0 %v1963
      %2014 = vmatprep.subr.bf16.mxu0 0
      %2015 = vmatpush2.bf16.msra.mxu0 %v1962
      %2016 = vmatprep.subr.bf16.mxu0 0
      %2017 = vmatpush2.bf16.msra.mxu0 %v1961
      %2018 = vmatprep.subr.bf16.mxu0 0
      %2019 = vmatpush2.bf16.msra.mxu0 %v1960
      %2020 = vmatprep.subr.bf16.mxu0 0
      %2021 = vmatpush2.bf16.msra.mxu0 %v1959
      %2022 = vmatprep.subr.bf16.mxu0 0
      %2023 = vmatpush2.bf16.msra.mxu0 %v1958
      %2024 = vmatprep.subr.bf16.mxu0 0
      %2025 = vmatpush2.bf16.msra.mxu0 %v1957
      %2026 = vmatprep.subr.bf16.mxu0 0
      %2027 = vmatpush2.bf16.msra.mxu0 %v1956
      %2028 = vmatprep.mubr.bf16.mxu0 %v1734
      %2029 = vmatmul.mubr.bf16.gmra.mxu0 %v1703
      %v2030 = vpop.f32.mrf.mxu0
      %v2031 = vadd.f32 0.0, %v2030
      %v2032 = vpop.f32.mrf.mxu0
      %v2033 = vpop.f32.mrf.mxu0
      %v2034 = vadd.f32 0.0, %v2033
      %v2035 = vpop.f32.mrf.mxu0
      %2036 = vmatprep.mubr.bf16.mxu0 %v1746
      %2037 = vmatmul.mubr.bf16.gmra.mxu0 %v1704
      %v2038 = vpop.f32.mrf.mxu0
      %v2039 = vadd.f32 0.0, %v2038
      %v2040 = vpop.f32.mrf.mxu0
      %v2041 = vpop.f32.mrf.mxu0
      %v2042 = vadd.f32 0.0, %v2041
      %v2043 = vpop.f32.mrf.mxu0
      %2044 = vmatprep.mubr.bf16.mxu0 %v1758
      %2045 = vmatmul.mubr.bf16.gmra.mxu0 %v1705
      %v2046 = vpop.f32.mrf.mxu0
      %v2047 = vadd.f32 0.0, %v2046
      %v2048 = vpop.f32.mrf.mxu0
      %v2049 = vpop.f32.mrf.mxu0
      %v2050 = vadd.f32 0.0, %v2049
      %v2051 = vpop.f32.mrf.mxu0
      %2052 = vmatprep.mubr.bf16.mxu0 %v1770
      %2053 = vmatmul.mubr.bf16.gmra.mxu0 %v1706
      %v2054 = vpop.f32.mrf.mxu0
      %v2055 = vadd.f32 0.0, %v2054
      %v2056 = vpop.f32.mrf.mxu0
      %v2057 = vpop.f32.mrf.mxu0
      %v2058 = vadd.f32 0.0, %v2057
      %v2059 = vpop.f32.mrf.mxu0
      %2060 = vdwg.mxu0
      %2061 = vmatprep.subr.bf16.mxu0 0
      %2062 = vmatpush1.bf16.msra.mxu0 %v1971
      %2063 = vmatprep.subr.bf16.mxu0 0
      %2064 = vmatpush1.bf16.msra.mxu0 %v1970
      %2065 = vmatprep.subr.bf16.mxu0 0
      %2066 = vmatpush1.bf16.msra.mxu0 %v1969
      %2067 = vmatprep.subr.bf16.mxu0 0
      %2068 = vmatpush1.bf16.msra.mxu0 %v1968
      %2069 = vmatprep.subr.bf16.mxu0 0
      %2070 = vmatpush1.bf16.msra.mxu0 %v1967
      %2071 = vmatprep.subr.bf16.mxu0 0
      %2072 = vmatpush1.bf16.msra.mxu0 %v1966
      %2073 = vmatprep.subr.bf16.mxu0 0
      %2074 = vmatpush1.bf16.msra.mxu0 %v1965
      %2075 = vmatprep.subr.bf16.mxu0 0
      %2076 = vmatpush1.bf16.msra.mxu0 %v1964
      %2077 = vmatprep.subr.bf16.mxu0 0
      %2078 = vmatpush2.bf16.msra.mxu0 0
      %2079 = vmatprep.subr.bf16.mxu0 0
      %2080 = vmatpush2.bf16.msra.mxu0 0
      %2081 = vmatprep.subr.bf16.mxu0 0
      %2082 = vmatpush2.bf16.msra.mxu0 0
      %2083 = vmatprep.subr.bf16.mxu0 0
      %2084 = vmatpush2.bf16.msra.mxu0 0
      %2085 = vmatprep.subr.bf16.mxu0 0
      %2086 = vmatpush2.bf16.msra.mxu0 0
      %2087 = vmatprep.subr.bf16.mxu0 0
      %2088 = vmatpush2.bf16.msra.mxu0 0
      %2089 = vmatprep.subr.bf16.mxu0 0
      %2090 = vmatpush2.bf16.msra.mxu0 0
      %2091 = vmatprep.subr.bf16.mxu0 0
      %2092 = vmatpush2.bf16.msra.mxu0 0
      %2093 = vmatprep.mubr.bf16.mxu0 0
      %2094 = vmatmul.mubr.bf16.gmra.mxu0 %v1789
      %v2095 = vpop.f32.mrf.mxu0
      %v2096 = vadd.f32 %v2031, %v2095
      %v2097 = vpop.f32.mrf.mxu0
      %v2098 = vpop.f32.mrf.mxu0
      %v2099 = vadd.f32 %v2034, %v2098
      %v2100 = vpop.f32.mrf.mxu0
      %2101 = vmatprep.mubr.bf16.mxu0 0
      %2102 = vmatmul.mubr.bf16.gmra.mxu0 %v1792
      %v2103 = vpop.f32.mrf.mxu0
      %v2104 = vadd.f32 %v2039, %v2103
      %v2105 = vpop.f32.mrf.mxu0
      %v2106 = vpop.f32.mrf.mxu0
      %v2107 = vadd.f32 %v2042, %v2106
      %v2108 = vpop.f32.mrf.mxu0
      %2109 = vmatprep.mubr.bf16.mxu0 0
      %2110 = vmatmul.mubr.bf16.gmra.mxu0 %v1795
      %v2111 = vpop.f32.mrf.mxu0
      %v2112 = vadd.f32 %v2047, %v2111
      %v2113 = vpop.f32.mrf.mxu0
      %v2114 = vpop.f32.mrf.mxu0
      %v2115 = vadd.f32 %v2050, %v2114
      %v2116 = vpop.f32.mrf.mxu0
      %2117 = vmatprep.mubr.bf16.mxu0 0
      %2118 = vmatmul.mubr.bf16.gmra.mxu0 %v1798
      %v2119 = vpop.f32.mrf.mxu0
      %v2120 = vadd.f32 %v2055, %v2119
      %v2121 = vpop.f32.mrf.mxu0
      %v2122 = vpop.f32.mrf.mxu0
      %v2123 = vadd.f32 %v2058, %v2122
      %v2124 = vpop.f32.mrf.mxu0
      %2125 = vdwg.mxu0
      %v2126 = vadd.f32 %v1640, %v2096
      %v2127 = vadd.f32 %v1643, %v2099
      %v2128 = vadd.f32 %v1648, %v2104
      %v2129 = vadd.f32 %v1651, %v2107
      %v2130 = vadd.f32 %v1656, %v2112
      %v2131 = vadd.f32 %v1659, %v2115
      %v2132 = vadd.f32 %v1664, %v2120
      %v2133 = vadd.f32 %v1667, %v2123
      %v2134 = vld [vmem:[%s4] sm:$0x1]
      %v2136 = vlaneseq
      %v2137 = vshrl.u32 %v2136, 7
      %v2138 = vsub.s32 0, %v2137
      %v2139 = vrot.slane %v2134, %v2138
      %v2141 = vadd.f32 %v2126, %v2139
      %v2142 = vadd.f32 %v2127, %v2139
      %v2143 = vadd.f32 %v2128, %v2139
      %v2144 = vadd.f32 %v2129, %v2139
      %v2145 = vadd.f32 %v2130, %v2139
      %v2146 = vadd.f32 %v2131, %v2139
      %v2147 = vadd.f32 %v2132, %v2139
      %v2148 = vadd.f32 %v2133, %v2139
      %v2149 = vmax.f32 %v2141, 0.0
      %v2150 = vmax.f32 %v2142, 0.0
      %v2151 = vmax.f32 %v2143, 0.0
      %v2152 = vmax.f32 %v2144, 0.0
      %v2153 = vmax.f32 %v2145, 0.0
      %v2154 = vmax.f32 %v2146, 0.0
      %v2155 = vmax.f32 %v2147, 0.0
      %v2156 = vmax.f32 %v2148, 0.0
      %v2157 = vpack.c.bf16 %v2150, %v2149
      %v2158 = vpack.c.bf16 %v2152, %v2151
      %v2159 = vpack.c.bf16 %v2154, %v2153
      %v2160 = vpack.c.bf16 %v2156, %v2155
      %v2161 = vld [vmem:[%s5] sm:$0xf]
      %v2162 = vld [vmem:[%s5 + $0x4] sm:$0xf]
      %v2163 = vld [vmem:[%s5 + $0x8] sm:$0xf]
      %v2164 = vld [vmem:[%s5 + $0xc] sm:$0xf]
      %v2165 = vld [vmem:[%s5 + $0x10] sm:$0xf]
      %v2166 = vld [vmem:[%s5 + $0x14] sm:$0xf]
      %v2167 = vld [vmem:[%s5 + $0x18] sm:$0xf]
      %v2168 = vld [vmem:[%s5 + $0x1c] sm:$0xf]
      %v2169 = vld [vmem:[%s5 + $0x20] sm:$0xf]
      %v2170 = vld [vmem:[%s5 + $0x24] sm:$0xf]
      %v2171 = vld [vmem:[%s5 + $0x28] sm:$0xf]
      %v2172 = vld [vmem:[%s5 + $0x2c] sm:$0xf]
      %v2173 = vld [vmem:[%s5 + $0x30] sm:$0xf]
      %v2174 = vld [vmem:[%s5 + $0x34] sm:$0xf]
      %v2175 = vld [vmem:[%s5 + $0x38] sm:$0xf]
      %v2176 = vld [vmem:[%s5 + $0x3c] sm:$0xf]
      %v2177 = vld [vmem:[%s6] sm:$0x1]
      %v2179 = vlaneseq
      %v2180 = vshrl.u32 %v2179, 7
      %v2181 = vsub.s32 0, %v2180
      %v2182 = vrot.slane %v2177, %v2181
      %v2200 = vunpack.c.l.b16 %v2161
      %v2201 = vunpack.c.l.b16 %v2162
      %v2202 = vunpack.c.l.b16 %v2163
      %v2203 = vunpack.c.l.b16 %v2164
      %v2204 = vunpack.c.l.b16 %v2165
      %v2205 = vunpack.c.l.b16 %v2166
      %v2206 = vunpack.c.l.b16 %v2167
      %v2207 = vunpack.c.l.b16 %v2168
      %v2208 = vunpack.c.l.b16 %v2169
      %v2209 = vunpack.c.l.b16 %v2170
      %v2210 = vunpack.c.l.b16 %v2171
      %v2211 = vunpack.c.l.b16 %v2172
      %v2212 = vunpack.c.l.b16 %v2173
      %v2213 = vunpack.c.l.b16 %v2174
      %v2214 = vunpack.c.l.b16 %v2175
      %v2215 = vunpack.c.l.b16 %v2176
      %v2216 = vpack.c.b16 %v2201, %v2200
      %v2217 = vpack.c.b16 %v2203, %v2202
      %v2218 = vpack.c.b16 %v2205, %v2204
      %v2219 = vpack.c.b16 %v2207, %v2206
      %v2220 = vpack.c.b16 %v2209, %v2208
      %v2221 = vpack.c.b16 %v2211, %v2210
      %v2222 = vpack.c.b16 %v2213, %v2212
      %v2223 = vpack.c.b16 %v2215, %v2214
      %2232 = vmatprep.subr.bf16.mxu0 0
      %2233 = vmatpush1.bf16.msra.mxu0 %v2223
      %2234 = vmatprep.subr.bf16.mxu0 0
      %2235 = vmatpush1.bf16.msra.mxu0 %v2222
      %2236 = vmatprep.subr.bf16.mxu0 0
      %2237 = vmatpush1.bf16.msra.mxu0 %v2221
      %2238 = vmatprep.subr.bf16.mxu0 0
      %2239 = vmatpush1.bf16.msra.mxu0 %v2220
      %2240 = vmatprep.subr.bf16.mxu0 0
      %2241 = vmatpush1.bf16.msra.mxu0 %v2219
      %2242 = vmatprep.subr.bf16.mxu0 0
      %2243 = vmatpush1.bf16.msra.mxu0 %v2218
      %2244 = vmatprep.subr.bf16.mxu0 0
      %2245 = vmatpush1.bf16.msra.mxu0 %v2217
      %2246 = vmatprep.subr.bf16.mxu0 0
      %2247 = vmatpush1.bf16.msra.mxu0 %v2216
      %2248 = vmatprep.subr.bf16.mxu0 0
      %2249 = vmatpush2.bf16.msra.mxu0 0
      %2250 = vmatprep.subr.bf16.mxu0 0
      %2251 = vmatpush2.bf16.msra.mxu0 0
      %2252 = vmatprep.subr.bf16.mxu0 0
      %2253 = vmatpush2.bf16.msra.mxu0 0
      %2254 = vmatprep.subr.bf16.mxu0 0
      %2255 = vmatpush2.bf16.msra.mxu0 0
      %2256 = vmatprep.subr.bf16.mxu0 0
      %2257 = vmatpush2.bf16.msra.mxu0 0
      %2258 = vmatprep.subr.bf16.mxu0 0
      %2259 = vmatpush2.bf16.msra.mxu0 0
      %2260 = vmatprep.subr.bf16.mxu0 0
      %2261 = vmatpush2.bf16.msra.mxu0 0
      %2262 = vmatprep.subr.bf16.mxu0 0
      %2263 = vmatpush2.bf16.msra.mxu0 0
      %2264 = vmatprep.mubr.bf16.mxu0 0
      %2265 = vmatmul.mubr.bf16.gmra.mxu0 %v2157
      %v2266 = vpop.f32.mrf.mxu0
      %v2267 = vadd.f32 %v2182, %v2266
      %v2268 = vpop.f32.mrf.mxu0
      %v2269 = vpop.f32.mrf.mxu0
      %v2270 = vadd.f32 %v2182, %v2269
      %v2271 = vpop.f32.mrf.mxu0
      %2272 = vmatprep.mubr.bf16.mxu0 0
      %2273 = vmatmul.mubr.bf16.gmra.mxu0 %v2158
      %v2274 = vpop.f32.mrf.mxu0
      %v2275 = vadd.f32 %v2182, %v2274
      %v2276 = vpop.f32.mrf.mxu0
      %v2277 = vpop.f32.mrf.mxu0
      %v2278 = vadd.f32 %v2182, %v2277
      %v2279 = vpop.f32.mrf.mxu0
      %2280 = vmatprep.mubr.bf16.mxu0 0
      %2281 = vmatmul.mubr.bf16.gmra.mxu0 %v2159
      %v2282 = vpop.f32.mrf.mxu0
      %v2283 = vadd.f32 %v2182, %v2282
      %v2284 = vpop.f32.mrf.mxu0
      %v2285 = vpop.f32.mrf.mxu0
      %v2286 = vadd.f32 %v2182, %v2285
      %v2287 = vpop.f32.mrf.mxu0
      %2288 = vmatprep.mubr.bf16.mxu0 0
      %2289 = vmatmul.mubr.bf16.gmra.mxu0 %v2160
      %v2290 = vpop.f32.mrf.mxu0
      %v2291 = vadd.f32 %v2182, %v2290
      %v2292 = vpop.f32.mrf.mxu0
      %v2293 = vpop.f32.mrf.mxu0
      %v2294 = vadd.f32 %v2182, %v2293
      %v2295 = vpop.f32.mrf.mxu0
      %2296 = vdwg.mxu0
      %2297 = vst [vmem:[%s302] sm:$0xff] %v2267
      %2298 = vst [vmem:[%s302 + $0x8] sm:$0xff] %v2270
      %2299 = vst [vmem:[%s302 + $0x10] sm:$0xff] %v2275
      %2300 = vst [vmem:[%s302 + $0x18] sm:$0xff] %v2278
      %2301 = vst [vmem:[%s302 + $0x20] sm:$0xff] %v2283
      %2302 = vst [vmem:[%s302 + $0x28] sm:$0xff] %v2286
      %2303 = vst [vmem:[%s302 + $0x30] sm:$0xff] %v2291
      %2304 = vst [vmem:[%s302 + $0x38] sm:$0xff] %v2294
      %s2305 = smul.u32 4, %s23
      %p2306 = scmp.lt.s32.totalorder %s22, 1
      %s2307 = scalar_select %p2306, %s22, 1
      %p2308 = scmp.lt.s32.totalorder %s2305, 15
      %s2309 = scalar_select %p2308, %s2305, 15
      %s2310 = smul.addr %s2309, 2
      %s2311 = smul.addr %s2307, 32
      %s2312 = sadd.s32 %s2310, %s2311
      %s2313 = smul.addr %s2312, 8
      %s2314 = scalar_lea.vmem %s7, %s2313
      // Predicated region
      $region49: #{bottleneck_forward.1} parent=47 // pred_check
        %p2315 = pneg %p202
      $region50: #{bottleneck_forward.1} parent=47 // pred_check_branch
        %2317 = sbr.rel (%p2315) target = $region52
      $region51: #{bottleneck_forward.1} parent=47 // pred_region
        %s2318 = smul.u32 4, %s23
      $region52: #{bottleneck_forward.1} parent=47 // pred_fallthru
        _
    $region48: #{bottleneck_forward.1} parent=5 // pred_fallthru
      _
    %p2319 = scmp.le.s32.totalorder 2, %s13
    // Predicated region
    $region53: #{bottleneck_forward.1} parent=5 // pred_check
      %p2320 = pneg %p2319
    $region54: #{bottleneck_forward.1} parent=5 // pred_check_branch
      %2322 = sbr.rel (%p2320) target = $region56
    $region55: #{bottleneck_forward.1} parent=5 // pred_region
      %s2323 = ssub.s32 %s13, 2
      // Predicated region
      $region57: #{bottleneck_forward.1} parent=55 // pred_check
        %p2324 = pneg %p208
      $region58: #{bottleneck_forward.1} parent=55 // pred_check_branch
        %2326 = sbr.rel (%p2324) target = $region60
      $region59: #{bottleneck_forward.1} parent=55 // pred_region
        %s2327 = smul.u32 4, %s25
        %p2328 = scmp.lt.s32.totalorder %s24, 1
        %s2329 = scalar_select %p2328, %s24, 1
        %p2330 = scmp.lt.s32.totalorder %s2327, 15
        %s2331 = scalar_select %p2330, %s2327, 15
        %s2332 = smul.addr %s2331, 2
        %s2333 = smul.addr %s2329, 32
        %s2334 = sadd.s32 %s2332, %s2333
        %s2335 = smul.addr %s2334, 8
        %s2336 = scalar_lea.vmem %s7, %s2335
      $region60: #{bottleneck_forward.1} parent=55 // pred_fallthru
        _
    $region56: #{bottleneck_forward.1} parent=5 // pred_fallthru
      _
  $region6: #{bottleneck_forward.1} parent=0 // loop_footer
    %s17 = sadd.s32 1, %s13
  $region7: #{bottleneck_forward.1} parent=0 // loop_footer_branch
    %12 = sbr.rel target = $region3
  $region8: #{bottleneck_forward.1} parent=0 // loop_exit
    _

</llo_original>
